<compile_context>
chip_gen: v6e
topology: v6e:2x2x1
jax: 0.10.0
libtpu: 0.0.40
codegen_flags: <defaults>
</compile_context>

<pallas_src>
import jax
import jax.numpy as jnp
import numpy as np
from jax.experimental import pallas as pl
from jax.experimental.pallas import tpu as pltpu


# -----------------------------------------------------------------------------
# Fused Pallas kernel: 1x1 conv+BN+ReLU -> KxK depthwise+BN+ReLU -> 1x1 conv+BN
# One batch element per grid step; all intermediates live in VMEM / vregs.
# -----------------------------------------------------------------------------
def _make_fused_kernel(H, W, K, stride, pad, Cin, Cmid, Cout):
    Hp, Wp = H + 2 * pad, W + 2 * pad
    Ho = (H - 1) // stride + 1
    Wo = (W - 1) // stride + 1

    def kernel(x_ref, w1_ref, b1_ref, w2_ref, b2_ref, w3_ref, b3_ref,
               o_ref, pad_ref):
        # x_ref   : (H*W, Cin)      one image, rows = flattened spatial
        # w1_ref  : (Cin, Cmid)     conv1 weight with BN1 scale folded in
        # b1_ref  : (1, Cmid)       folded BN1 bias
        # w2_ref  : (K, K, Cmid)    depthwise weight with BN2 scale folded in
        # b2_ref  : (1, Cmid)       folded BN2 bias
        # w3_ref  : (Cmid, Cout)    conv3 weight with BN3 scale folded in
        # b3_ref  : (1, Cout)       folded BN3 bias
        # o_ref   : (Ho*Wo, Cout)
        # pad_ref : (Hp, Wp, Cmid)  VMEM scratch for the zero-padded activation

        # ---- stage 1: 1x1 conv (one MXU dot) + bias + ReLU ------------------
        x = x_ref[...]                                           # (H*W, Cin)
        h1 = jnp.dot(x, w1_ref[...], preferred_element_type=jnp.float32)
        h1 = jnp.maximum(h1 + b1_ref[...], 0.0)                  # (H*W, Cmid)

        # ---- stage 2: KxK depthwise conv, zero-padded inside VMEM -----------
        pad_ref[...] = jnp.zeros_like(pad_ref)
        pad_ref[pad:pad + H, pad:pad + W, :] = h1.reshape(H, W, Cmid)
        xp = pad_ref[...]                                        # (Hp, Wp, Cmid)
        w2 = w2_ref[...]                                         # (K, K, Cmid)

        acc = jnp.zeros((Ho, Wo, Cmid), jnp.float32)
        for kh in range(K):
            for kw in range(K):
                if stride == 1:
                    tap = jax.lax.slice(xp, (kh, kw, 0),
                                        (kh + Ho, kw + Wo, Cmid))
                else:
                    tap = jax.lax.slice(
                        xp, (kh, kw, 0),
                        (kh + (Ho - 1) * stride + 1,
                         kw + (Wo - 1) * stride + 1, Cmid),
                        strides=(stride, stride, 1))
                wk = jax.lax.slice(w2, (kh, kw, 0), (kh + 1, kw + 1, Cmid))
                acc = acc + tap * wk                             # VPU FMA
        h2 = jnp.maximum(acc + b2_ref[...], 0.0)                 # (Ho, Wo, Cmid)

        # ---- stage 3: 1x1 conv (one MXU dot) + bias (no ReLU) ---------------
        h2f = h2.reshape(Ho * Wo, Cmid)
        y = jnp.dot(h2f, w3_ref[...], preferred_element_type=jnp.float32)
        o_ref[...] = (y + b3_ref[...]).astype(o_ref.dtype)

    return kernel, Ho, Wo, Hp, Wp


def linear_bottleneck_forward(x_nchw, params, *, stride=1, k=3):
    """LinearBottleneck.forward (eval-mode BN). Input/output NCHW, float32."""
    N, Cin, H, W = x_nchw.shape
    w1, w2, w3 = params["w1"], params["w2"], params["w3"]   # torch-layout weights
    Cmid = w1.shape[0]
    Cout = w3.shape[0]
    pad = k // 2

    s1, b1 = params["bn1"]
    s2, b2 = params["bn2"]
    s3, b3 = params["bn3"]

    # Fold BN scales into the conv weights (kernel epilogue is just +bias).
    w1s = (w1 * s1[:, None]).T                    # (Cin, Cmid)
    w2s = jnp.transpose(w2, (1, 2, 0)) * s2       # (K, K, Cmid)
    w3s = (w3 * s3[:, None]).T                    # (Cmid, Cout)

    kernel, Ho, Wo, Hp, Wp = _make_fused_kernel(
        H, W, k, stride, pad, Cin, Cmid, Cout)

    # NCHW -> (N, H*W, Cin): spatial on sublanes, channels on lanes.
    x_rows = jnp.transpose(x_nchw, (0, 2, 3, 1)).reshape(N, H * W, Cin)
    x_rows = x_rows.astype(jnp.float32)

    out = pl.pallas_call(
        kernel,
        out_shape=jax.ShapeDtypeStruct((N, Ho * Wo, Cout), jnp.float32),
        grid_spec=pltpu.PrefetchScalarGridSpec(
            num_scalar_prefetch=0,
            grid=(N,),
            in_specs=[
                pl.BlockSpec((pl.Squeezed(), H * W, Cin), lambda b: (b, 0, 0)),
                pl.BlockSpec((Cin, Cmid), lambda b: (0, 0)),
                pl.BlockSpec((1, Cmid), lambda b: (0, 0)),
                pl.BlockSpec((k, k, Cmid), lambda b: (0, 0, 0)),
                pl.BlockSpec((1, Cmid), lambda b: (0, 0)),
                pl.BlockSpec((Cmid, Cout), lambda b: (0, 0)),
                pl.BlockSpec((1, Cout), lambda b: (0, 0)),
            ],
            out_specs=pl.BlockSpec((pl.Squeezed(), Ho * Wo, Cout),
                                   lambda b: (b, 0, 0)),
            scratch_shapes=[pltpu.VMEM((Hp, Wp, Cmid), jnp.float32)],
        ),
        compiler_params=pltpu.CompilerParams(
            dimension_semantics=("parallel",)),
    )(x_rows, w1s, b1.reshape(1, Cmid), w2s, b2.reshape(1, Cmid),
      w3s, b3.reshape(1, Cout))

    out = out.reshape(N, Ho, Wo, Cout)
    return jnp.transpose(out, (0, 3, 1, 2))       # -> NCHW


# -----------------------------------------------------------------------------
# Parameter construction (deterministic, synthetic, PyTorch-equivalent layouts).
# -----------------------------------------------------------------------------
def fold_bn(gamma, beta, mean, var, eps=1e-5):
    scale = gamma / jnp.sqrt(var + eps)
    bias = beta - mean * scale
    return scale.astype(jnp.float32), bias.astype(jnp.float32)


def make_linear_bottleneck_params(key, inplanes, outplanes, k=3, t=6):
    mid = inplanes * t

    def bn_p(key, c):
        k1, k2, k3, k4 = jax.random.split(key, 4)
        gamma = 0.5 + jax.random.uniform(k1, (c,), jnp.float32)
        beta = 0.1 * jax.random.normal(k2, (c,), jnp.float32)
        mean = 0.1 * jax.random.normal(k3, (c,), jnp.float32)
        var = 0.5 + jax.random.uniform(k4, (c,), jnp.float32)
        return fold_bn(gamma, beta, mean, var)

    keys = jax.random.split(key, 6)
    return {
        # PyTorch layouts with trivial dims dropped:
        "w1": 0.1 * jax.random.normal(keys[0], (mid, inplanes), jnp.float32),   # conv1 (Cout, Cin)
        "w2": 0.1 * jax.random.normal(keys[1], (mid, k, k), jnp.float32),       # conv2 depthwise (C, K, K)
        "w3": 0.1 * jax.random.normal(keys[2], (outplanes, mid), jnp.float32),  # conv3 (Cout, Cin)
        "bn1": bn_p(keys[3], mid),
        "bn2": bn_p(keys[4], mid),
        "bn3": bn_p(keys[5], outplanes),
    }


# -----------------------------------------------------------------------------
# Pure-JAX reference (for correctness check only).
# -----------------------------------------------------------------------------
def _bn_affine(y, scale, bias):
    return y * scale[None, :, None, None] + bias[None, :, None, None]


def linear_bottleneck_forward_ref(x_nchw, params, *, stride=1, k=3):
    x = x_nchw.astype(jnp.float32)
    pad = k // 2
    Cmid = params["w1"].shape[0]
    w1 = params["w1"][:, :, None, None]          # (Cmid, Cin, 1, 1)
    w2 = params["w2"][:, None, :, :]             # (Cmid, 1, K, K) depthwise
    w3 = params["w3"][:, :, None, None]          # (Cout, Cmid, 1, 1)
    s1, b1 = params["bn1"]
    s2, b2 = params["bn2"]
    s3, b3 = params["bn3"]
    hi = jax.lax.Precision.HIGHEST

    y = jax.lax.conv_general_dilated(
        x, w1, (1, 1), [(0, 0), (0, 0)],
        dimension_numbers=("NCHW", "OIHW", "NCHW"), precision=hi)
    y = jnp.maximum(_bn_affine(y, s1, b1), 0.0)

    y = jax.lax.conv_general_dilated(
        y, w2, (stride, stride), [(pad, pad), (pad, pad)],
        dimension_numbers=("NCHW", "OIHW", "NCHW"),
        feature_group_count=Cmid, precision=hi)
    y = jnp.maximum(_bn_affine(y, s2, b2), 0.0)

    y = jax.lax.conv_general_dilated(
        y, w3, (1, 1), [(0, 0), (0, 0)],
        dimension_numbers=("NCHW", "OIHW", "NCHW"), precision=hi)
    return _bn_affine(y, s3, b3)


# -----------------------------------------------------------------------------
if __name__ == "__main__":
    # LinearBottleneck(inplanes=4, outplanes=8, size_in=16, stride=1, k=3, t=6)
    inplanes, outplanes, size_in, stride, k, t = 4, 8, 16, 1, 3, 6
    N = 2

    key = jax.random.PRNGKey(0)
    kx, kp = jax.random.split(key)
    x = jax.random.normal(kx, (N, inplanes, size_in, size_in), jnp.float32)
    params = make_linear_bottleneck_params(kp, inplanes, outplanes, k=k, t=t)

    out = jax.block_until_ready(
        linear_bottleneck_forward(x, params, stride=stride, k=k))
    ref = jax.block_until_ready(
        linear_bottleneck_forward_ref(x, params, stride=stride, k=k))

    size_out = (size_in - 1 + stride) // stride
    assert out.shape == (N, outplanes, size_out, size_out), out.shape
    np.testing.assert_allclose(np.asarray(out), np.asarray(ref),
                               rtol=1e-4, atol=1e-4)

    print("KERNEL_OK")
</pallas_src>

<mosaic_0001>
module attributes {stable_mosaic.version = 11 : i64} {
  func.func @kernel(%arg0: i32, %arg1: memref<1x256x4xf32, #tpu.memory_space<vmem>>, %arg2: memref<4x24xf32, #tpu.memory_space<vmem>>, %arg3: memref<1x24xf32, #tpu.memory_space<vmem>>, %arg4: memref<3x3x24xf32, #tpu.memory_space<vmem>>, %arg5: memref<1x24xf32, #tpu.memory_space<vmem>>, %arg6: memref<24x8xf32, #tpu.memory_space<vmem>>, %arg7: memref<1x8xf32, #tpu.memory_space<vmem>>, %arg8: memref<1x256x8xf32, #tpu.memory_space<vmem>>, %arg9: memref<18x18x24xf32, #tpu.memory_space<vmem>>) attributes {dimension_semantics = [#tpu.dimension_semantics<parallel>], iteration_bounds = array<i64: 2>, scalar_prefetch = 0 : i64, scratch_operands = 1 : i64, tpu.core_type = #tpu.core_type<tc>, window_params = [{transform_indices = @transform_0, window_bounds = array<i64: 1, 256, 4>}, {pipeline_mode = #tpu.pipeline_mode<synchronous>, transform_indices = @transform_1, window_bounds = array<i64: 4, 24>}, {pipeline_mode = #tpu.pipeline_mode<synchronous>, transform_indices = @transform_2, window_bounds = array<i64: 1, 24>}, {pipeline_mode = #tpu.pipeline_mode<synchronous>, transform_indices = @transform_3, window_bounds = array<i64: 3, 3, 24>}, {pipeline_mode = #tpu.pipeline_mode<synchronous>, transform_indices = @transform_4, window_bounds = array<i64: 1, 24>}, {pipeline_mode = #tpu.pipeline_mode<synchronous>, transform_indices = @transform_5, window_bounds = array<i64: 24, 8>}, {pipeline_mode = #tpu.pipeline_mode<synchronous>, transform_indices = @transform_6, window_bounds = array<i64: 1, 8>}, {transform_indices = @transform_7, window_bounds = array<i64: 1, 256, 8>}]} {
    %c0 = arith.constant 0 : index
    %c0_0 = arith.constant 0 : index
    %c0_1 = arith.constant 0 : index
    %0 = vector.load %arg1[%c0, %c0_0, %c0_1] : memref<1x256x4xf32, #tpu.memory_space<vmem>>, vector<1x256x4xf32>
    %1 = vector.shape_cast %0 : vector<1x256x4xf32> to vector<256x4xf32>
    %c0_2 = arith.constant 0 : index
    %c0_3 = arith.constant 0 : index
    %2 = vector.load %arg2[%c0_2, %c0_3] : memref<4x24xf32, #tpu.memory_space<vmem>>, vector<4x24xf32>
    %cst = arith.constant dense<0.000000e+00> : vector<256x24xf32>
    %3 = tpu.matmul %1, %2, %cst {dimension_numbers = #tpu.dot_dimension_numbers<[1], [0], [0], [1], [0, 0, 1, 1], [], []>} : vector<256x4xf32>, vector<4x24xf32>, vector<256x24xf32> -> vector<256x24xf32>
    %c0_4 = arith.constant 0 : index
    %c0_5 = arith.constant 0 : index
    %4 = vector.load %arg3[%c0_4, %c0_5] : memref<1x24xf32, #tpu.memory_space<vmem>>, vector<1x24xf32>
    %5 = vector.broadcast %4 : vector<1x24xf32> to vector<256x24xf32>
    %6 = arith.addf %3, %5 : vector<256x24xf32>
    %cst_6 = arith.constant 0.000000e+00 : f32
    %7 = vector.broadcast %cst_6 : f32 to vector<256x24xf32>
    %8 = arith.maximumf %6, %7 : vector<256x24xf32>
    %cst_7 = arith.constant 0.000000e+00 : f32
    %9 = vector.broadcast %cst_7 : f32 to vector<18x18x24xf32>
    %c0_8 = arith.constant 0 : index
    %c0_9 = arith.constant 0 : index
    %c0_10 = arith.constant 0 : index
    %10 = vector.load %arg9[%c0_8, %c0_9, %c0_10] : memref<18x18x24xf32, #tpu.memory_space<vmem>>, vector<18x18x24xf32>
    tpu.vector_store %arg9[%c0_8, %c0_9, %c0_10], %9 {strides = array<i32>} : memref<18x18x24xf32, #tpu.memory_space<vmem>>, vector<18x18x24xf32>,
    %11 = vector.shape_cast %8 : vector<256x24xf32> to vector<16x16x24xf32>
    %c1 = arith.constant 1 : index
    %c1_11 = arith.constant 1 : index
    %c0_12 = arith.constant 0 : index
    %12 = vector.load %arg9[%c1, %c1_11, %c0_12] : memref<18x18x24xf32, #tpu.memory_space<vmem>>, vector<16x16x24xf32>
    tpu.vector_store %arg9[%c1, %c1_11, %c0_12], %11 {strides = array<i32>} : memref<18x18x24xf32, #tpu.memory_space<vmem>>, vector<16x16x24xf32>,
    %c0_13 = arith.constant 0 : index
    %c0_14 = arith.constant 0 : index
    %c0_15 = arith.constant 0 : index
    %13 = vector.load %arg9[%c0_13, %c0_14, %c0_15] : memref<18x18x24xf32, #tpu.memory_space<vmem>>, vector<18x18x24xf32>
    %c0_16 = arith.constant 0 : index
    %c0_17 = arith.constant 0 : index
    %c0_18 = arith.constant 0 : index
    %14 = vector.load %arg4[%c0_16, %c0_17, %c0_18] : memref<3x3x24xf32, #tpu.memory_space<vmem>>, vector<3x3x24xf32>
    %cst_19 = arith.constant 0.000000e+00 : f32
    %15 = vector.broadcast %cst_19 : f32 to vector<16x16x24xf32>
    %16 = vector.extract_strided_slice %13 {offsets = [0, 0, 0], sizes = [16, 16, 24], strides = [1, 1, 1]} : vector<18x18x24xf32> to vector<16x16x24xf32>
    %17 = vector.extract_strided_slice %14 {offsets = [0, 0, 0], sizes = [1, 1, 24], strides = [1, 1, 1]} : vector<3x3x24xf32> to vector<1x1x24xf32>
    %18 = vector.broadcast %17 : vector<1x1x24xf32> to vector<16x16x24xf32>
    %19 = arith.mulf %16, %18 : vector<16x16x24xf32>
    %20 = arith.addf %15, %19 : vector<16x16x24xf32>
    %21 = vector.extract_strided_slice %13 {offsets = [0, 1, 0], sizes = [16, 16, 24], strides = [1, 1, 1]} : vector<18x18x24xf32> to vector<16x16x24xf32>
    %22 = vector.extract_strided_slice %14 {offsets = [0, 1, 0], sizes = [1, 1, 24], strides = [1, 1, 1]} : vector<3x3x24xf32> to vector<1x1x24xf32>
    %23 = vector.broadcast %22 : vector<1x1x24xf32> to vector<16x16x24xf32>
    %24 = arith.mulf %21, %23 : vector<16x16x24xf32>
    %25 = arith.addf %20, %24 : vector<16x16x24xf32>
    %26 = vector.extract_strided_slice %13 {offsets = [0, 2, 0], sizes = [16, 16, 24], strides = [1, 1, 1]} : vector<18x18x24xf32> to vector<16x16x24xf32>
    %27 = vector.extract_strided_slice %14 {offsets = [0, 2, 0], sizes = [1, 1, 24], strides = [1, 1, 1]} : vector<3x3x24xf32> to vector<1x1x24xf32>
    %28 = vector.broadcast %27 : vector<1x1x24xf32> to vector<16x16x24xf32>
    %29 = arith.mulf %26, %28 : vector<16x16x24xf32>
    %30 = arith.addf %25, %29 : vector<16x16x24xf32>
    %31 = vector.extract_strided_slice %13 {offsets = [1, 0, 0], sizes = [16, 16, 24], strides = [1, 1, 1]} : vector<18x18x24xf32> to vector<16x16x24xf32>
    %32 = vector.extract_strided_slice %14 {offsets = [1, 0, 0], sizes = [1, 1, 24], strides = [1, 1, 1]} : vector<3x3x24xf32> to vector<1x1x24xf32>
    %33 = vector.broadcast %32 : vector<1x1x24xf32> to vector<16x16x24xf32>
    %34 = arith.mulf %31, %33 : vector<16x16x24xf32>
    %35 = arith.addf %30, %34 : vector<16x16x24xf32>
    %36 = vector.extract_strided_slice %13 {offsets = [1, 1, 0], sizes = [16, 16, 24], strides = [1, 1, 1]} : vector<18x18x24xf32> to vector<16x16x24xf32>
    %37 = vector.extract_strided_slice %14 {offsets = [1, 1, 0], sizes = [1, 1, 24], strides = [1, 1, 1]} : vector<3x3x24xf32> to vector<1x1x24xf32>
    %38 = vector.broadcast %37 : vector<1x1x24xf32> to vector<16x16x24xf32>
    %39 = arith.mulf %36, %38 : vector<16x16x24xf32>
    %40 = arith.addf %35, %39 : vector<16x16x24xf32>
    %41 = vector.extract_strided_slice %13 {offsets = [1, 2, 0], sizes = [16, 16, 24], strides = [1, 1, 1]} : vector<18x18x24xf32> to vector<16x16x24xf32>
    %42 = vector.extract_strided_slice %14 {offsets = [1, 2, 0], sizes = [1, 1, 24], strides = [1, 1, 1]} : vector<3x3x24xf32> to vector<1x1x24xf32>
    %43 = vector.broadcast %42 : vector<1x1x24xf32> to vector<16x16x24xf32>
    %44 = arith.mulf %41, %43 : vector<16x16x24xf32>
    %45 = arith.addf %40, %44 : vector<16x16x24xf32>
    %46 = vector.extract_strided_slice %13 {offsets = [2, 0, 0], sizes = [16, 16, 24], strides = [1, 1, 1]} : vector<18x18x24xf32> to vector<16x16x24xf32>
    %47 = vector.extract_strided_slice %14 {offsets = [2, 0, 0], sizes = [1, 1, 24], strides = [1, 1, 1]} : vector<3x3x24xf32> to vector<1x1x24xf32>
    %48 = vector.broadcast %47 : vector<1x1x24xf32> to vector<16x16x24xf32>
    %49 = arith.mulf %46, %48 : vector<16x16x24xf32>
    %50 = arith.addf %45, %49 : vector<16x16x24xf32>
    %51 = vector.extract_strided_slice %13 {offsets = [2, 1, 0], sizes = [16, 16, 24], strides = [1, 1, 1]} : vector<18x18x24xf32> to vector<16x16x24xf32>
    %52 = vector.extract_strided_slice %14 {offsets = [2, 1, 0], sizes = [1, 1, 24], strides = [1, 1, 1]} : vector<3x3x24xf32> to vector<1x1x24xf32>
    %53 = vector.broadcast %52 : vector<1x1x24xf32> to vector<16x16x24xf32>
    %54 = arith.mulf %51, %53 : vector<16x16x24xf32>
    %55 = arith.addf %50, %54 : vector<16x16x24xf32>
    %56 = vector.extract_strided_slice %13 {offsets = [2, 2, 0], sizes = [16, 16, 24], strides = [1, 1, 1]} : vector<18x18x24xf32> to vector<16x16x24xf32>
    %57 = vector.extract_strided_slice %14 {offsets = [2, 2, 0], sizes = [1, 1, 24], strides = [1, 1, 1]} : vector<3x3x24xf32> to vector<1x1x24xf32>
    %58 = vector.broadcast %57 : vector<1x1x24xf32> to vector<16x16x24xf32>
    %59 = arith.mulf %56, %58 : vector<16x16x24xf32>
    %60 = arith.addf %55, %59 : vector<16x16x24xf32>
    %c0_20 = arith.constant 0 : index
    %c0_21 = arith.constant 0 : index
    %61 = vector.load %arg5[%c0_20, %c0_21] : memref<1x24xf32, #tpu.memory_space<vmem>>, vector<1x24xf32>
    %62 = vector.shape_cast %61 : vector<1x24xf32> to vector<1x1x24xf32>
    %63 = vector.broadcast %62 : vector<1x1x24xf32> to vector<16x16x24xf32>
    %64 = arith.addf %60, %63 : vector<16x16x24xf32>
    %cst_22 = arith.constant 0.000000e+00 : f32
    %65 = vector.broadcast %cst_22 : f32 to vector<16x16x24xf32>
    %66 = arith.maximumf %64, %65 : vector<16x16x24xf32>
    %67 = vector.shape_cast %66 : vector<16x16x24xf32> to vector<256x24xf32>
    %c0_23 = arith.constant 0 : index
    %c0_24 = arith.constant 0 : index
    %68 = vector.load %arg6[%c0_23, %c0_24] : memref<24x8xf32, #tpu.memory_space<vmem>>, vector<24x8xf32>
    %cst_25 = arith.constant dense<0.000000e+00> : vector<256x8xf32>
    %69 = tpu.matmul %67, %68, %cst_25 {dimension_numbers = #tpu.dot_dimension_numbers<[1], [0], [0], [1], [0, 0, 1, 1], [], []>} : vector<256x24xf32>, vector<24x8xf32>, vector<256x8xf32> -> vector<256x8xf32>
    %c0_26 = arith.constant 0 : index
    %c0_27 = arith.constant 0 : index
    %70 = vector.load %arg7[%c0_26, %c0_27] : memref<1x8xf32, #tpu.memory_space<vmem>>, vector<1x8xf32>
    %71 = vector.broadcast %70 : vector<1x8xf32> to vector<256x8xf32>
    %72 = arith.addf %69, %71 : vector<256x8xf32>
    %c0_28 = arith.constant 0 : index
    %c0_29 = arith.constant 0 : index
    %c0_30 = arith.constant 0 : index
    %73 = vector.load %arg8[%c0_28, %c0_29, %c0_30] : memref<1x256x8xf32, #tpu.memory_space<vmem>>, vector<1x256x8xf32>
    %74 = vector.shape_cast %73 : vector<1x256x8xf32> to vector<256x8xf32>
    %75 = vector.shape_cast %72 : vector<256x8xf32> to vector<1x256x8xf32>
    tpu.vector_store %arg8[%c0_28, %c0_29, %c0_30], %75 {strides = array<i32>} : memref<1x256x8xf32, #tpu.memory_space<vmem>>, vector<1x256x8xf32>,
    return
  }
  func.func @transform_0(%arg0: i32) -> (i32, i32, i32) {
    %c0_i32 = arith.constant 0 : i32
    %c0_i32_0 = arith.constant 0 : i32
    %c0_i32_1 = arith.constant 0 : i32
    return %arg0, %c0_i32, %c0_i32_0 : i32, i32, i32
  }
  func.func @transform_1(%arg0: i32) -> (i32, i32) {
    %c0_i32 = arith.constant 0 : i32
    %c0_i32_0 = arith.constant 0 : i32
    %c0_i32_1 = arith.constant 0 : i32
    return %c0_i32, %c0_i32_0 : i32, i32
  }
  func.func @transform_2(%arg0: i32) -> (i32, i32) {
    %c0_i32 = arith.constant 0 : i32
    %c0_i32_0 = arith.constant 0 : i32
    %c0_i32_1 = arith.constant 0 : i32
    return %c0_i32, %c0_i32_0 : i32, i32
  }
  func.func @transform_3(%arg0: i32) -> (i32, i32, i32) {
    %c0_i32 = arith.constant 0 : i32
    %c0_i32_0 = arith.constant 0 : i32
    %c0_i32_1 = arith.constant 0 : i32
    %c0_i32_2 = arith.constant 0 : i32
    return %c0_i32, %c0_i32_0, %c0_i32_1 : i32, i32, i32
  }
  func.func @transform_4(%arg0: i32) -> (i32, i32) {
    %c0_i32 = arith.constant 0 : i32
    %c0_i32_0 = arith.constant 0 : i32
    %c0_i32_1 = arith.constant 0 : i32
    return %c0_i32, %c0_i32_0 : i32, i32
  }
  func.func @transform_5(%arg0: i32) -> (i32, i32) {
    %c0_i32 = arith.constant 0 : i32
    %c0_i32_0 = arith.constant 0 : i32
    %c0_i32_1 = arith.constant 0 : i32
    return %c0_i32, %c0_i32_0 : i32, i32
  }
  func.func @transform_6(%arg0: i32) -> (i32, i32) {
    %c0_i32 = arith.constant 0 : i32
    %c0_i32_0 = arith.constant 0 : i32
    %c0_i32_1 = arith.constant 0 : i32
    return %c0_i32, %c0_i32_0 : i32, i32
  }
  func.func @transform_7(%arg0: i32) -> (i32, i32, i32) {
    %c0_i32 = arith.constant 0 : i32
    %c0_i32_0 = arith.constant 0 : i32
    %c0_i32_1 = arith.constant 0 : i32
    return %arg0, %c0_i32, %c0_i32_0 : i32, i32, i32
  }
}

</mosaic_0001>

<llo_original>
// kernel: tpu_custom_call.1
$region0: #{tpu_custom_call.1}
  #allocation0 [shape = 'u32[]', space=smem, size = 0x4, offset = 0x4, fixed_abs, tag = 'smem constant byte address 0x4 - core index']
  #allocation1 [shape = 'u32[144,128]{1,0:T(1,128)}', space=vmem, size = 0x12000, scoped, tag = 'internal scratch']
  #allocation2 [shape = 'f32[18,18,24]{2,1,0:T(8,128)}', space=vmem, size = 0x36000, scoped, tag = 'scratch operand']
  %s0 = inlined_call_operand.vmem [shape: f32[2,256,4], index: 0, kind: input, shape index: {}]
  %s1 = inlined_call_operand.vmem [shape: f32[4,24], index: 1, kind: input, shape index: {}]
  %s2 = inlined_call_operand.vmem [shape: f32[1,24], index: 2, kind: input, shape index: {}]
  %s3 = inlined_call_operand.vmem [shape: f32[3,3,24], index: 3, kind: input, shape index: {}]
  %s4 = inlined_call_operand.vmem [shape: f32[1,24], index: 4, kind: input, shape index: {}]
  %s5 = inlined_call_operand.vmem [shape: f32[24,8], index: 5, kind: input, shape index: {}]
  %s6 = inlined_call_operand.vmem [shape: f32[1,8], index: 6, kind: input, shape index: {}]
  %s7 = inlined_call_operand.vmem [shape: f32[2,256,8], index: 7, kind: output, shape index: {}]
  %s8 = sld [smem:[#allocation0]]
  $region61: #{tpu_custom_call.1} parent=0
    _
  %s10 = ssub.s32 1, %s8
  %s11 = scalar_select 0, %s10, %s8
  loop: start=0, step=1, limit=4
  $region2: #{tpu_custom_call.1} parent=0 // loop_pre_header
    _
  $region3: #{tpu_custom_call.1} parent=0 // loop_header
    %s13 = sphi 0, %s17
    %p14 = scmp.ge.s32.totalorder %s13, 4
    %s23 = sphi 0, %s25
    %s26 = sphi 0, %s23
    %s27 = sphi 0, %s26
    %s43 = sphi 0, %s27
    %s47 = sphi 0, %s47
    %s49 = sphi 0, %s47
    %s50 = sphi 0, %s49
    %s64 = sphi 0, %s50
    %s68 = sphi 0, %s68
    %s70 = sphi 0, %s68
    %s71 = sphi 0, %s70
    %s85 = sphi 0, %s71
    %s89 = sphi 0, %s89
    %s91 = sphi 0, %s89
    %s92 = sphi 0, %s91
    %s106 = sphi 0, %s92
    %s110 = sphi 0, %s110
    %s112 = sphi 0, %s110
    %s113 = sphi 0, %s112
    %s127 = sphi 0, %s113
    %s131 = sphi 0, %s131
    %s133 = sphi 0, %s131
    %s134 = sphi 0, %s133
    %s148 = sphi 0, %s134
    %s152 = sphi 0, %s152
    %s154 = sphi 0, %s152
    %s155 = sphi 0, %s154
    %s169 = sphi 0, %s155
    %s175 = sphi 0, %s177
    %s178 = sphi 0, %s175
    %s179 = sphi 0, %s178
    %s195 = sphi 0, %s179
  $region4: #{tpu_custom_call.1} parent=0 // loop_header_branch
    %16 = sbr.rel (%p14) target = $region8
  $region5: #{tpu_custom_call.1} parent=0 // loop_body
    %s18 = ssub.s32 %s13, 1
    %s19 = ssub.s32 %s13, 2
    %s20 = sadd.s32 %s13, 1
    %s21 = ssub.s32 %s13, %s20
    %p22 = scmp.eq.s32.totalorder %s21, 0
    %s24 = sadd.s32 %s23, 1
    %s25 = scalar_select %p22, %s23, %s24
    %p28 = pneg %p22
    %p29 = scmp.eq.s32.totalorder %s13, 1
    %p30 = por %p28, %p29
    %p31 = scmp.ne.s32.totalorder %s23, %s26
    %p32 = scmp.eq.s32.totalorder %s13, 0
    %p33 = por %p31, %p32
    %p34 = scmp.ne.s32.totalorder %s23, %s26
    %p35 = scmp.eq.s32.totalorder %s18, 1
    %p36 = por %p34, %p35
    %p37 = scmp.ne.s32.totalorder %s26, %s27
    %p38 = scmp.eq.s32.totalorder %s18, 0
    %p39 = por %p37, %p38
    %p40 = scmp.ne.s32.totalorder %s26, %s27
    %p41 = scmp.eq.s32.totalorder %s19, 1
    %p42 = por %p40, %p41
    %p44 = scmp.ne.s32.totalorder %s27, %s43
    %p45 = scmp.eq.s32.totalorder %s19, 0
    %p46 = por %p44, %p45
    %s48 = sadd.s32 %s47, 1
    %p51 = scmp.eq.s32.totalorder %s13, 1
    %p52 = scmp.ne.s32.totalorder %s47, %s49
    %p53 = scmp.eq.s32.totalorder %s13, 0
    %p54 = por %p52, %p53
    %p55 = scmp.ne.s32.totalorder %s47, %s49
    %p56 = scmp.eq.s32.totalorder %s18, 1
    %p57 = por %p55, %p56
    %p58 = scmp.ne.s32.totalorder %s49, %s50
    %p59 = scmp.eq.s32.totalorder %s18, 0
    %p60 = por %p58, %p59
    %p61 = scmp.ne.s32.totalorder %s49, %s50
    %p62 = scmp.eq.s32.totalorder %s19, 1
    %p63 = por %p61, %p62
    %p65 = scmp.ne.s32.totalorder %s50, %s64
    %p66 = scmp.eq.s32.totalorder %s19, 0
    %p67 = por %p65, %p66
    %s69 = sadd.s32 %s68, 1
    %p72 = scmp.eq.s32.totalorder %s13, 1
    %p73 = scmp.ne.s32.totalorder %s68, %s70
    %p74 = scmp.eq.s32.totalorder %s13, 0
    %p75 = por %p73, %p74
    %p76 = scmp.ne.s32.totalorder %s68, %s70
    %p77 = scmp.eq.s32.totalorder %s18, 1
    %p78 = por %p76, %p77
    %p79 = scmp.ne.s32.totalorder %s70, %s71
    %p80 = scmp.eq.s32.totalorder %s18, 0
    %p81 = por %p79, %p80
    %p82 = scmp.ne.s32.totalorder %s70, %s71
    %p83 = scmp.eq.s32.totalorder %s19, 1
    %p84 = por %p82, %p83
    %p86 = scmp.ne.s32.totalorder %s71, %s85
    %p87 = scmp.eq.s32.totalorder %s19, 0
    %p88 = por %p86, %p87
    %s90 = sadd.s32 %s89, 1
    %p93 = scmp.eq.s32.totalorder %s13, 1
    %p94 = scmp.ne.s32.totalorder %s89, %s91
    %p95 = scmp.eq.s32.totalorder %s13, 0
    %p96 = por %p94, %p95
    %p97 = scmp.ne.s32.totalorder %s89, %s91
    %p98 = scmp.eq.s32.totalorder %s18, 1
    %p99 = por %p97, %p98
    %p100 = scmp.ne.s32.totalorder %s91, %s92
    %p101 = scmp.eq.s32.totalorder %s18, 0
    %p102 = por %p100, %p101
    %p103 = scmp.ne.s32.totalorder %s91, %s92
    %p104 = scmp.eq.s32.totalorder %s19, 1
    %p105 = por %p103, %p104
    %p107 = scmp.ne.s32.totalorder %s92, %s106
    %p108 = scmp.eq.s32.totalorder %s19, 0
    %p109 = por %p107, %p108
    %s111 = sadd.s32 %s110, 1
    %p114 = scmp.eq.s32.totalorder %s13, 1
    %p115 = scmp.ne.s32.totalorder %s110, %s112
    %p116 = scmp.eq.s32.totalorder %s13, 0
    %p117 = por %p115, %p116
    %p118 = scmp.ne.s32.totalorder %s110, %s112
    %p119 = scmp.eq.s32.totalorder %s18, 1
    %p120 = por %p118, %p119
    %p121 = scmp.ne.s32.totalorder %s112, %s113
    %p122 = scmp.eq.s32.totalorder %s18, 0
    %p123 = por %p121, %p122
    %p124 = scmp.ne.s32.totalorder %s112, %s113
    %p125 = scmp.eq.s32.totalorder %s19, 1
    %p126 = por %p124, %p125
    %p128 = scmp.ne.s32.totalorder %s113, %s127
    %p129 = scmp.eq.s32.totalorder %s19, 0
    %p130 = por %p128, %p129
    %s132 = sadd.s32 %s131, 1
    %p135 = scmp.eq.s32.totalorder %s13, 1
    %p136 = scmp.ne.s32.totalorder %s131, %s133
    %p137 = scmp.eq.s32.totalorder %s13, 0
    %p138 = por %p136, %p137
    %p139 = scmp.ne.s32.totalorder %s131, %s133
    %p140 = scmp.eq.s32.totalorder %s18, 1
    %p141 = por %p139, %p140
    %p142 = scmp.ne.s32.totalorder %s133, %s134
    %p143 = scmp.eq.s32.totalorder %s18, 0
    %p144 = por %p142, %p143
    %p145 = scmp.ne.s32.totalorder %s133, %s134
    %p146 = scmp.eq.s32.totalorder %s19, 1
    %p147 = por %p145, %p146
    %p149 = scmp.ne.s32.totalorder %s134, %s148
    %p150 = scmp.eq.s32.totalorder %s19, 0
    %p151 = por %p149, %p150
    %s153 = sadd.s32 %s152, 1
    %p156 = scmp.eq.s32.totalorder %s13, 1
    %p157 = scmp.ne.s32.totalorder %s152, %s154
    %p158 = scmp.eq.s32.totalorder %s13, 0
    %p159 = por %p157, %p158
    %p160 = scmp.ne.s32.totalorder %s152, %s154
    %p161 = scmp.eq.s32.totalorder %s18, 1
    %p162 = por %p160, %p161
    %p163 = scmp.ne.s32.totalorder %s154, %s155
    %p164 = scmp.eq.s32.totalorder %s18, 0
    %p165 = por %p163, %p164
    %p166 = scmp.ne.s32.totalorder %s154, %s155
    %p167 = scmp.eq.s32.totalorder %s19, 1
    %p168 = por %p166, %p167
    %p170 = scmp.ne.s32.totalorder %s155, %s169
    %p171 = scmp.eq.s32.totalorder %s19, 0
    %p172 = por %p170, %p171
    %s173 = ssub.s32 %s13, %s20
    %p174 = scmp.eq.s32.totalorder %s173, 0
    %s176 = sadd.s32 %s175, 1
    %s177 = scalar_select %p174, %s175, %s176
    %p180 = pneg %p174
    %p181 = scmp.eq.s32.totalorder %s13, 1
    %p182 = por %p180, %p181
    %p183 = scmp.ne.s32.totalorder %s175, %s178
    %p184 = scmp.eq.s32.totalorder %s13, 0
    %p185 = por %p183, %p184
    %p186 = scmp.ne.s32.totalorder %s175, %s178
    %p187 = scmp.eq.s32.totalorder %s18, 1
    %p188 = por %p186, %p187
    %p189 = scmp.ne.s32.totalorder %s178, %s179
    %p190 = scmp.eq.s32.totalorder %s18, 0
    %p191 = por %p189, %p190
    %p192 = scmp.ne.s32.totalorder %s178, %s179
    %p193 = scmp.eq.s32.totalorder %s19, 1
    %p194 = por %p192, %p193
    %p196 = scmp.ne.s32.totalorder %s179, %s195
    %p197 = scmp.eq.s32.totalorder %s19, 0
    %p198 = por %p196, %p197
    %p199 = scmp.le.s32.totalorder 1, %s13
    %p200 = scmp.lt.s32.totalorder %s13, 3
    %p201 = pnand %p199, %p200
    %p202 = pneg %p201
    // Predicated region
    $region9: #{tpu_custom_call.1} parent=5 // pred_check
      _
    $region10: #{tpu_custom_call.1} parent=5 // pred_check_branch
      %204 = sbr.rel (%p201) target = $region12
    $region11: #{tpu_custom_call.1} parent=5 // pred_region
      %s205 = ssub.s32 %s13, 1
      // Predicated region
      $region13: #{tpu_custom_call.1} parent=11 // pred_check
        %p206 = pneg %p60
      $region14: #{tpu_custom_call.1} parent=11 // pred_check_branch
        %208 = sbr.rel (%p206) target = $region16
      $region15: #{tpu_custom_call.1} parent=11 // pred_region
        _
      $region16: #{tpu_custom_call.1} parent=11 // pred_fallthru
        _
      // Predicated region
      $region17: #{tpu_custom_call.1} parent=11 // pred_check
        %p209 = pneg %p81
      $region18: #{tpu_custom_call.1} parent=11 // pred_check_branch
        %211 = sbr.rel (%p209) target = $region20
      $region19: #{tpu_custom_call.1} parent=11 // pred_region
        _
      $region20: #{tpu_custom_call.1} parent=11 // pred_fallthru
        _
      // Predicated region
      $region21: #{tpu_custom_call.1} parent=11 // pred_check
        %p212 = pneg %p102
      $region22: #{tpu_custom_call.1} parent=11 // pred_check_branch
        %214 = sbr.rel (%p212) target = $region24
      $region23: #{tpu_custom_call.1} parent=11 // pred_region
        _
      $region24: #{tpu_custom_call.1} parent=11 // pred_fallthru
        _
      // Predicated region
      $region25: #{tpu_custom_call.1} parent=11 // pred_check
        %p215 = pneg %p123
      $region26: #{tpu_custom_call.1} parent=11 // pred_check_branch
        %217 = sbr.rel (%p215) target = $region28
      $region27: #{tpu_custom_call.1} parent=11 // pred_region
        _
      $region28: #{tpu_custom_call.1} parent=11 // pred_fallthru
        _
      // Predicated region
      $region29: #{tpu_custom_call.1} parent=11 // pred_check
        %p218 = pneg %p144
      $region30: #{tpu_custom_call.1} parent=11 // pred_check_branch
        %220 = sbr.rel (%p218) target = $region32
      $region31: #{tpu_custom_call.1} parent=11 // pred_region
        _
      $region32: #{tpu_custom_call.1} parent=11 // pred_fallthru
        _
      // Predicated region
      $region33: #{tpu_custom_call.1} parent=11 // pred_check
        %p221 = pneg %p165
      $region34: #{tpu_custom_call.1} parent=11 // pred_check_branch
        %223 = sbr.rel (%p221) target = $region36
      $region35: #{tpu_custom_call.1} parent=11 // pred_region
        _
      $region36: #{tpu_custom_call.1} parent=11 // pred_fallthru
        _
    $region12: #{tpu_custom_call.1} parent=5 // pred_fallthru
      _
    %p224 = scmp.lt.s32.totalorder %s13, 2
    // Predicated region
    $region37: #{tpu_custom_call.1} parent=5 // pred_check
      %p225 = pneg %p224
    $region38: #{tpu_custom_call.1} parent=5 // pred_check_branch
      %227 = sbr.rel (%p225) target = $region40
    $region39: #{tpu_custom_call.1} parent=5 // pred_region
      // Predicated region
      $region41: #{tpu_custom_call.1} parent=39 // pred_check
        %p228 = pneg %p33
      $region42: #{tpu_custom_call.1} parent=39 // pred_check_branch
        %230 = sbr.rel (%p228) target = $region44
      $region43: #{tpu_custom_call.1} parent=39 // pred_region
        %p231 = scmp.lt.s32.totalorder %s13, 1
        %s232 = scalar_select %p231, %s13, 1
        %s233 = smul.addr %s232, 32
        %s234 = smul.addr %s233, 8
        %s235 = scalar_lea.vmem %s0, %s234
      $region44: #{tpu_custom_call.1} parent=39 // pred_fallthru
        _
    $region40: #{tpu_custom_call.1} parent=5 // pred_fallthru
      _
    %p236 = scmp.le.s32.totalorder 1, %s13
    %p237 = scmp.lt.s32.totalorder %s13, 3
    %p238 = pnand %p236, %p237
    %p239 = pneg %p238
    // Predicated region
    $region45: #{tpu_custom_call.1} parent=5 // pred_check
      _
    $region46: #{tpu_custom_call.1} parent=5 // pred_check_branch
      %241 = sbr.rel (%p238) target = $region48
    $region47: #{tpu_custom_call.1} parent=5 // pred_region
      %s242 = ssub.s32 %s13, 1
      %p243 = scmp.lt.s32.totalorder %s18, 1
      %s244 = scalar_select %p243, %s18, 1
      %s245 = smul.addr %s244, 32
      %s246 = smul.addr %s245, 8
      %s247 = scalar_lea.vmem %s0, %s246
      %p248 = pneg %p39
      %p249 = pneg %p36
      %p250 = pneg %p60
      %p251 = pneg %p57
      %p252 = pneg %p81
      %p253 = pneg %p78
      %p254 = pneg %p102
      %p255 = pneg %p99
      %p256 = pneg %p123
      %p257 = pneg %p120
      %p258 = pneg %p144
      %p259 = pneg %p141
      %p260 = pneg %p165
      %p261 = pneg %p162
      %p262 = pneg %p191
      %p263 = pneg %p188
      %p264 = scmp.lt.s32.totalorder %s18, 1
      %s265 = scalar_select %p264, %s18, 1
      %s266 = smul.addr %s265, 32
      %s267 = smul.addr %s266, 8
      %s268 = scalar_lea.vmem %s7, %s267
      %p269 = scmp.lt.s32.totalorder %s18, 1
      %s270 = scalar_select %p269, %s18, 1
      %s271 = smul.addr %s270, 32
      %s272 = smul.addr %s271, 8
      %s273 = scalar_lea.vmem %s0, %s272
      %p274 = scmp.lt.s32.totalorder %s18, 1
      %s275 = scalar_select %p274, %s18, 1
      %s276 = smul.addr %s275, 32
      %s277 = smul.addr %s276, 8
      %s278 = scalar_lea.vmem %s7, %s277
      %v279 = vld [vmem:[%s273] sm:$0xff]
      %v280 = vld [vmem:[%s273 + $0x8] sm:$0xff]
      %v281 = vld [vmem:[%s273 + $0x10] sm:$0xff]
      %v282 = vld [vmem:[%s273 + $0x18] sm:$0xff]
      %v283 = vld [vmem:[%s273 + $0x20] sm:$0xff]
      %v284 = vld [vmem:[%s273 + $0x28] sm:$0xff]
      %v285 = vld [vmem:[%s273 + $0x30] sm:$0xff]
      %v286 = vld [vmem:[%s273 + $0x38] sm:$0xff]
      %v287 = vld [vmem:[%s273 + $0x40] sm:$0xff]
      %v288 = vld [vmem:[%s273 + $0x48] sm:$0xff]
      %v289 = vld [vmem:[%s273 + $0x50] sm:$0xff]
      %v290 = vld [vmem:[%s273 + $0x58] sm:$0xff]
      %v291 = vld [vmem:[%s273 + $0x60] sm:$0xff]
      %v292 = vld [vmem:[%s273 + $0x68] sm:$0xff]
      %v293 = vld [vmem:[%s273 + $0x70] sm:$0xff]
      %v294 = vld [vmem:[%s273 + $0x78] sm:$0xff]
      %v295 = vld [vmem:[%s273 + $0x80] sm:$0xff]
      %v296 = vld [vmem:[%s273 + $0x88] sm:$0xff]
      %v297 = vld [vmem:[%s273 + $0x90] sm:$0xff]
      %v298 = vld [vmem:[%s273 + $0x98] sm:$0xff]
      %v299 = vld [vmem:[%s273 + $0xa0] sm:$0xff]
      %v300 = vld [vmem:[%s273 + $0xa8] sm:$0xff]
      %v301 = vld [vmem:[%s273 + $0xb0] sm:$0xff]
      %v302 = vld [vmem:[%s273 + $0xb8] sm:$0xff]
      %v303 = vld [vmem:[%s273 + $0xc0] sm:$0xff]
      %v304 = vld [vmem:[%s273 + $0xc8] sm:$0xff]
      %v305 = vld [vmem:[%s273 + $0xd0] sm:$0xff]
      %v306 = vld [vmem:[%s273 + $0xd8] sm:$0xff]
      %v307 = vld [vmem:[%s273 + $0xe0] sm:$0xff]
      %v308 = vld [vmem:[%s273 + $0xe8] sm:$0xff]
      %v309 = vld [vmem:[%s273 + $0xf0] sm:$0xff]
      %v310 = vld [vmem:[%s273 + $0xf8] sm:$0xff]
      %v311 = vld [vmem:[%s1] sm:$0xf]
      %v312 = vld [vmem:[%s2] sm:$0x1]
      %v314 = vlaneseq
      %v315 = vshrl.u32 %v314, 7
      %v316 = vsub.s32 0, %v315
      %v317 = vrot.slane %v312, %v316
      %vm319 = vcmask 31744
      %v321 = vsel %vm319, %v279, 0
      %v324 = vsel %vm319, %v280, 0
      %v327 = vsel %vm319, %v281, 0
      %v330 = vsel %vm319, %v282, 0
      %v333 = vsel %vm319, %v283, 0
      %v336 = vsel %vm319, %v284, 0
      %v339 = vsel %vm319, %v285, 0
      %v342 = vsel %vm319, %v286, 0
      %v345 = vsel %vm319, %v287, 0
      %v348 = vsel %vm319, %v288, 0
      %v351 = vsel %vm319, %v289, 0
      %v354 = vsel %vm319, %v290, 0
      %v357 = vsel %vm319, %v291, 0
      %v360 = vsel %vm319, %v292, 0
      %v363 = vsel %vm319, %v293, 0
      %v366 = vsel %vm319, %v294, 0
      %v369 = vsel %vm319, %v295, 0
      %v372 = vsel %vm319, %v296, 0
      %v375 = vsel %vm319, %v297, 0
      %v378 = vsel %vm319, %v298, 0
      %v381 = vsel %vm319, %v299, 0
      %v384 = vsel %vm319, %v300, 0
      %v387 = vsel %vm319, %v301, 0
      %v390 = vsel %vm319, %v302, 0
      %v393 = vsel %vm319, %v303, 0
      %v396 = vsel %vm319, %v304, 0
      %v399 = vsel %vm319, %v305, 0
      %v402 = vsel %vm319, %v306, 0
      %v405 = vsel %vm319, %v307, 0
      %v408 = vsel %vm319, %v308, 0
      %v411 = vsel %vm319, %v309, 0
      %v414 = vsel %vm319, %v310, 0
      %vm416 = vcmask 1043456
      %v418 = vsel %vm416, %v311, 0
      %420 = vmatprep.subr.mxu0 0.0
      %421 = vmatpush1.msra.mxu0 0.0
      %422 = vmatprep.subr.mxu0 0.0
      %423 = vmatpush1.msra.mxu0 0.0
      %424 = vmatprep.subr.mxu0 0.0
      %425 = vmatpush1.msra.mxu0 0.0
      %426 = vmatprep.subr.mxu0 0.0
      %427 = vmatpush1.msra.mxu0 0.0
      %428 = vmatprep.subr.mxu0 0.0
      %429 = vmatpush1.msra.mxu0 0.0
      %430 = vmatprep.subr.mxu0 0.0
      %431 = vmatpush1.msra.mxu0 0.0
      %432 = vmatprep.subr.mxu0 0.0
      %433 = vmatpush1.msra.mxu0 0.0
      %434 = vmatprep.subr.mxu0 0.0
      %435 = vmatpush1.msra.mxu0 0.0
      %436 = vmatprep.subr.mxu0 0.0
      %437 = vmatpush1.msra.mxu0 0.0
      %438 = vmatprep.subr.mxu0 0.0
      %439 = vmatpush1.msra.mxu0 0.0
      %440 = vmatprep.subr.mxu0 0.0
      %441 = vmatpush1.msra.mxu0 0.0
      %442 = vmatprep.subr.mxu0 0.0
      %443 = vmatpush1.msra.mxu0 0.0
      %444 = vmatprep.subr.mxu0 0.0
      %445 = vmatpush1.msra.mxu0 0.0
      %446 = vmatprep.subr.mxu0 0.0
      %447 = vmatpush1.msra.mxu0 0.0
      %448 = vmatprep.subr.mxu0 0.0
      %449 = vmatpush1.msra.mxu0 0.0
      %450 = vmatprep.subr.mxu0 0.0
      %451 = vmatpush1.msra.mxu0 %v418
      %452 = vmatprep.subr.mxu0 0.0
      %453 = vmatpush2.msra.mxu0 0.0
      %454 = vmatprep.subr.mxu0 0.0
      %455 = vmatpush2.msra.mxu0 0.0
      %456 = vmatprep.subr.mxu0 0.0
      %457 = vmatpush2.msra.mxu0 0.0
      %458 = vmatprep.subr.mxu0 0.0
      %459 = vmatpush2.msra.mxu0 0.0
      %460 = vmatprep.subr.mxu0 0.0
      %461 = vmatpush2.msra.mxu0 0.0
      %462 = vmatprep.subr.mxu0 0.0
      %463 = vmatpush2.msra.mxu0 0.0
      %464 = vmatprep.subr.mxu0 0.0
      %465 = vmatpush2.msra.mxu0 0.0
      %466 = vmatprep.subr.mxu0 0.0
      %467 = vmatpush2.msra.mxu0 0.0
      %468 = vmatprep.subr.mxu0 0.0
      %469 = vmatpush2.msra.mxu0 0.0
      %470 = vmatprep.subr.mxu0 0.0
      %471 = vmatpush2.msra.mxu0 0.0
      %472 = vmatprep.subr.mxu0 0.0
      %473 = vmatpush2.msra.mxu0 0.0
      %474 = vmatprep.subr.mxu0 0.0
      %475 = vmatpush2.msra.mxu0 0.0
      %476 = vmatprep.subr.mxu0 0.0
      %477 = vmatpush2.msra.mxu0 0.0
      %478 = vmatprep.subr.mxu0 0.0
      %479 = vmatpush2.msra.mxu0 0.0
      %480 = vmatprep.subr.mxu0 0.0
      %481 = vmatpush2.msra.mxu0 0.0
      %482 = vmatprep.subr.mxu0 0.0
      %483 = vmatpush2.msra.mxu0 0.0
      %484 = vmatprep.mubr.f32.mxu0 0.0
      %485 = vmatmul.mubr.f32.gmra.mxu0 %v321
      %v486 = vpop.f32.mrf.mxu0
      %v487 = vadd.f32 %v317, %v486
      %v488 = vpop.f32.mrf.mxu0
      %489 = vmatprep.mubr.f32.mxu0 0.0
      %490 = vmatmul.mubr.f32.gmra.mxu0 %v324
      %v491 = vpop.f32.mrf.mxu0
      %v492 = vadd.f32 %v317, %v491
      %v493 = vpop.f32.mrf.mxu0
      %494 = vmatprep.mubr.f32.mxu0 0.0
      %495 = vmatmul.mubr.f32.gmra.mxu0 %v327
      %v496 = vpop.f32.mrf.mxu0
      %v497 = vadd.f32 %v317, %v496
      %v498 = vpop.f32.mrf.mxu0
      %499 = vmatprep.mubr.f32.mxu0 0.0
      %500 = vmatmul.mubr.f32.gmra.mxu0 %v330
      %v501 = vpop.f32.mrf.mxu0
      %v502 = vadd.f32 %v317, %v501
      %v503 = vpop.f32.mrf.mxu0
      %504 = vmatprep.mubr.f32.mxu0 0.0
      %505 = vmatmul.mubr.f32.gmra.mxu0 %v333
      %v506 = vpop.f32.mrf.mxu0
      %v507 = vadd.f32 %v317, %v506
      %v508 = vpop.f32.mrf.mxu0
      %509 = vmatprep.mubr.f32.mxu0 0.0
      %510 = vmatmul.mubr.f32.gmra.mxu0 %v336
      %v511 = vpop.f32.mrf.mxu0
      %v512 = vadd.f32 %v317, %v511
      %v513 = vpop.f32.mrf.mxu0
      %514 = vmatprep.mubr.f32.mxu0 0.0
      %515 = vmatmul.mubr.f32.gmra.mxu0 %v339
      %v516 = vpop.f32.mrf.mxu0
      %v517 = vadd.f32 %v317, %v516
      %v518 = vpop.f32.mrf.mxu0
      %519 = vmatprep.mubr.f32.mxu0 0.0
      %520 = vmatmul.mubr.f32.gmra.mxu0 %v342
      %v521 = vpop.f32.mrf.mxu0
      %v522 = vadd.f32 %v317, %v521
      %v523 = vpop.f32.mrf.mxu0
      %524 = vmatprep.mubr.f32.mxu0 0.0
      %525 = vmatmul.mubr.f32.gmra.mxu0 %v345
      %v526 = vpop.f32.mrf.mxu0
      %v527 = vadd.f32 %v317, %v526
      %v528 = vpop.f32.mrf.mxu0
      %529 = vmatprep.mubr.f32.mxu0 0.0
      %530 = vmatmul.mubr.f32.gmra.mxu0 %v348
      %v531 = vpop.f32.mrf.mxu0
      %v532 = vadd.f32 %v317, %v531
      %v533 = vpop.f32.mrf.mxu0
      %534 = vmatprep.mubr.f32.mxu0 0.0
      %535 = vmatmul.mubr.f32.gmra.mxu0 %v351
      %v536 = vpop.f32.mrf.mxu0
      %v537 = vadd.f32 %v317, %v536
      %v538 = vpop.f32.mrf.mxu0
      %539 = vmatprep.mubr.f32.mxu0 0.0
      %540 = vmatmul.mubr.f32.gmra.mxu0 %v354
      %v541 = vpop.f32.mrf.mxu0
      %v542 = vadd.f32 %v317, %v541
      %v543 = vpop.f32.mrf.mxu0
      %544 = vmatprep.mubr.f32.mxu0 0.0
      %545 = vmatmul.mubr.f32.gmra.mxu0 %v357
      %v546 = vpop.f32.mrf.mxu0
      %v547 = vadd.f32 %v317, %v546
      %v548 = vpop.f32.mrf.mxu0
      %549 = vmatprep.mubr.f32.mxu0 0.0
      %550 = vmatmul.mubr.f32.gmra.mxu0 %v360
      %v551 = vpop.f32.mrf.mxu0
      %v552 = vadd.f32 %v317, %v551
      %v553 = vpop.f32.mrf.mxu0
      %554 = vmatprep.mubr.f32.mxu0 0.0
      %555 = vmatmul.mubr.f32.gmra.mxu0 %v363
      %v556 = vpop.f32.mrf.mxu0
      %v557 = vadd.f32 %v317, %v556
      %v558 = vpop.f32.mrf.mxu0
      %559 = vmatprep.mubr.f32.mxu0 0.0
      %560 = vmatmul.mubr.f32.gmra.mxu0 %v366
      %v561 = vpop.f32.mrf.mxu0
      %v562 = vadd.f32 %v317, %v561
      %v563 = vpop.f32.mrf.mxu0
      %564 = vmatprep.mubr.f32.mxu0 0.0
      %565 = vmatmul.mubr.f32.gmra.mxu0 %v369
      %v566 = vpop.f32.mrf.mxu0
      %v567 = vadd.f32 %v317, %v566
      %v568 = vpop.f32.mrf.mxu0
      %569 = vmatprep.mubr.f32.mxu0 0.0
      %570 = vmatmul.mubr.f32.gmra.mxu0 %v372
      %v571 = vpop.f32.mrf.mxu0
      %v572 = vadd.f32 %v317, %v571
      %v573 = vpop.f32.mrf.mxu0
      %574 = vmatprep.mubr.f32.mxu0 0.0
      %575 = vmatmul.mubr.f32.gmra.mxu0 %v375
      %v576 = vpop.f32.mrf.mxu0
      %v577 = vadd.f32 %v317, %v576
      %v578 = vpop.f32.mrf.mxu0
      %579 = vmatprep.mubr.f32.mxu0 0.0
      %580 = vmatmul.mubr.f32.gmra.mxu0 %v378
      %v581 = vpop.f32.mrf.mxu0
      %v582 = vadd.f32 %v317, %v581
      %v583 = vpop.f32.mrf.mxu0
      %584 = vmatprep.mubr.f32.mxu0 0.0
      %585 = vmatmul.mubr.f32.gmra.mxu0 %v381
      %v586 = vpop.f32.mrf.mxu0
      %v587 = vadd.f32 %v317, %v586
      %v588 = vpop.f32.mrf.mxu0
      %589 = vmatprep.mubr.f32.mxu0 0.0
      %590 = vmatmul.mubr.f32.gmra.mxu0 %v384
      %v591 = vpop.f32.mrf.mxu0
      %v592 = vadd.f32 %v317, %v591
      %v593 = vpop.f32.mrf.mxu0
      %594 = vmatprep.mubr.f32.mxu0 0.0
      %595 = vmatmul.mubr.f32.gmra.mxu0 %v387
      %v596 = vpop.f32.mrf.mxu0
      %v597 = vadd.f32 %v317, %v596
      %v598 = vpop.f32.mrf.mxu0
      %599 = vmatprep.mubr.f32.mxu0 0.0
      %600 = vmatmul.mubr.f32.gmra.mxu0 %v390
      %v601 = vpop.f32.mrf.mxu0
      %v602 = vadd.f32 %v317, %v601
      %v603 = vpop.f32.mrf.mxu0
      %604 = vmatprep.mubr.f32.mxu0 0.0
      %605 = vmatmul.mubr.f32.gmra.mxu0 %v393
      %v606 = vpop.f32.mrf.mxu0
      %v607 = vadd.f32 %v317, %v606
      %v608 = vpop.f32.mrf.mxu0
      %609 = vmatprep.mubr.f32.mxu0 0.0
      %610 = vmatmul.mubr.f32.gmra.mxu0 %v396
      %v611 = vpop.f32.mrf.mxu0
      %v612 = vadd.f32 %v317, %v611
      %v613 = vpop.f32.mrf.mxu0
      %614 = vmatprep.mubr.f32.mxu0 0.0
      %615 = vmatmul.mubr.f32.gmra.mxu0 %v399
      %v616 = vpop.f32.mrf.mxu0
      %v617 = vadd.f32 %v317, %v616
      %v618 = vpop.f32.mrf.mxu0
      %619 = vmatprep.mubr.f32.mxu0 0.0
      %620 = vmatmul.mubr.f32.gmra.mxu0 %v402
      %v621 = vpop.f32.mrf.mxu0
      %v622 = vadd.f32 %v317, %v621
      %v623 = vpop.f32.mrf.mxu0
      %624 = vmatprep.mubr.f32.mxu0 0.0
      %625 = vmatmul.mubr.f32.gmra.mxu0 %v405
      %v626 = vpop.f32.mrf.mxu0
      %v627 = vadd.f32 %v317, %v626
      %v628 = vpop.f32.mrf.mxu0
      %629 = vmatprep.mubr.f32.mxu0 0.0
      %630 = vmatmul.mubr.f32.gmra.mxu0 %v408
      %v631 = vpop.f32.mrf.mxu0
      %v632 = vadd.f32 %v317, %v631
      %v633 = vpop.f32.mrf.mxu0
      %634 = vmatprep.mubr.f32.mxu0 0.0
      %635 = vmatmul.mubr.f32.gmra.mxu0 %v411
      %v636 = vpop.f32.mrf.mxu0
      %v637 = vadd.f32 %v317, %v636
      %v638 = vpop.f32.mrf.mxu0
      %639 = vmatprep.mubr.f32.mxu0 0.0
      %640 = vmatmul.mubr.f32.gmra.mxu0 %v414
      %v641 = vpop.f32.mrf.mxu0
      %v642 = vadd.f32 %v317, %v641
      %v643 = vpop.f32.mrf.mxu0
      %644 = vdwg.mxu0
      %v645 = vmax.f32 %v487, 0.0
      %v646 = vmax.f32 %v492, 0.0
      %v647 = vmax.f32 %v497, 0.0
      %v648 = vmax.f32 %v502, 0.0
      %v649 = vmax.f32 %v507, 0.0
      %v650 = vmax.f32 %v512, 0.0
      %v651 = vmax.f32 %v517, 0.0
      %v652 = vmax.f32 %v522, 0.0
      %v653 = vmax.f32 %v527, 0.0
      %v654 = vmax.f32 %v532, 0.0
      %v655 = vmax.f32 %v537, 0.0
      %v656 = vmax.f32 %v542, 0.0
      %v657 = vmax.f32 %v547, 0.0
      %v658 = vmax.f32 %v552, 0.0
      %v659 = vmax.f32 %v557, 0.0
      %v660 = vmax.f32 %v562, 0.0
      %v661 = vmax.f32 %v567, 0.0
      %v662 = vmax.f32 %v572, 0.0
      %v663 = vmax.f32 %v577, 0.0
      %v664 = vmax.f32 %v582, 0.0
      %v665 = vmax.f32 %v587, 0.0
      %v666 = vmax.f32 %v592, 0.0
      %v667 = vmax.f32 %v597, 0.0
      %v668 = vmax.f32 %v602, 0.0
      %v669 = vmax.f32 %v607, 0.0
      %v670 = vmax.f32 %v612, 0.0
      %v671 = vmax.f32 %v617, 0.0
      %v672 = vmax.f32 %v622, 0.0
      %v673 = vmax.f32 %v627, 0.0
      %v674 = vmax.f32 %v632, 0.0
      %v675 = vmax.f32 %v637, 0.0
      %v676 = vmax.f32 %v642, 0.0
      %vm677 = vcmask 195584
      %678 = vst.msk [vmem:[#allocation2] sm:$0xff] %vm677, 0.0
      %679 = vst.msk [vmem:[#allocation2 + $0x8] sm:$0xff] %vm677, 0.0
      %vm680 = vcmask 189440
      %681 = vst.msk [vmem:[#allocation2 + $0x10] sm:$0x3] %vm680, 0.0
      %682 = vst.msk [vmem:[#allocation2 + $0x18] sm:$0xff] %vm677, 0.0
      %683 = vst.msk [vmem:[#allocation2 + $0x20] sm:$0xff] %vm677, 0.0
      %684 = vst.msk [vmem:[#allocation2 + $0x28] sm:$0x3] %vm680, 0.0
      %685 = vst.msk [vmem:[#allocation2 + $0x30] sm:$0xff] %vm677, 0.0
      %686 = vst.msk [vmem:[#allocation2 + $0x38] sm:$0xff] %vm677, 0.0
      %687 = vst.msk [vmem:[#allocation2 + $0x40] sm:$0x3] %vm680, 0.0
      %688 = vst.msk [vmem:[#allocation2 + $0x48] sm:$0xff] %vm677, 0.0
      %689 = vst.msk [vmem:[#allocation2 + $0x50] sm:$0xff] %vm677, 0.0
      %690 = vst.msk [vmem:[#allocation2 + $0x58] sm:$0x3] %vm680, 0.0
      %691 = vst.msk [vmem:[#allocation2 + $0x60] sm:$0xff] %vm677, 0.0
      %692 = vst.msk [vmem:[#allocation2 + $0x68] sm:$0xff] %vm677, 0.0
      %693 = vst.msk [vmem:[#allocation2 + $0x70] sm:$0x3] %vm680, 0.0
      %694 = vst.msk [vmem:[#allocation2 + $0x78] sm:$0xff] %vm677, 0.0
      %695 = vst.msk [vmem:[#allocation2 + $0x80] sm:$0xff] %vm677, 0.0
      %696 = vst.msk [vmem:[#allocation2 + $0x88] sm:$0x3] %vm680, 0.0
      %697 = vst.msk [vmem:[#allocation2 + $0x90] sm:$0xff] %vm677, 0.0
      %698 = vst.msk [vmem:[#allocation2 + $0x98] sm:$0xff] %vm677, 0.0
      %699 = vst.msk [vmem:[#allocation2 + $0xa0] sm:$0x3] %vm680, 0.0
      %700 = vst.msk [vmem:[#allocation2 + $0xa8] sm:$0xff] %vm677, 0.0
      %701 = vst.msk [vmem:[#allocation2 + $0xb0] sm:$0xff] %vm677, 0.0
      %702 = vst.msk [vmem:[#allocation2 + $0xb8] sm:$0x3] %vm680, 0.0
      %703 = vst.msk [vmem:[#allocation2 + $0xc0] sm:$0xff] %vm677, 0.0
      %704 = vst.msk [vmem:[#allocation2 + $0xc8] sm:$0xff] %vm677, 0.0
      %705 = vst.msk [vmem:[#allocation2 + $0xd0] sm:$0x3] %vm680, 0.0
      %706 = vst.msk [vmem:[#allocation2 + $0xd8] sm:$0xff] %vm677, 0.0
      %707 = vst.msk [vmem:[#allocation2 + $0xe0] sm:$0xff] %vm677, 0.0
      %708 = vst.msk [vmem:[#allocation2 + $0xe8] sm:$0x3] %vm680, 0.0
      %709 = vst.msk [vmem:[#allocation2 + $0xf0] sm:$0xff] %vm677, 0.0
      %710 = vst.msk [vmem:[#allocation2 + $0xf8] sm:$0xff] %vm677, 0.0
      %711 = vst.msk [vmem:[#allocation2 + $0x100] sm:$0x3] %vm680, 0.0
      %712 = vst.msk [vmem:[#allocation2 + $0x108] sm:$0xff] %vm677, 0.0
      %713 = vst.msk [vmem:[#allocation2 + $0x110] sm:$0xff] %vm677, 0.0
      %714 = vst.msk [vmem:[#allocation2 + $0x118] sm:$0x3] %vm680, 0.0
      %715 = vst.msk [vmem:[#allocation2 + $0x120] sm:$0xff] %vm677, 0.0
      %716 = vst.msk [vmem:[#allocation2 + $0x128] sm:$0xff] %vm677, 0.0
      %717 = vst.msk [vmem:[#allocation2 + $0x130] sm:$0x3] %vm680, 0.0
      %718 = vst.msk [vmem:[#allocation2 + $0x138] sm:$0xff] %vm677, 0.0
      %719 = vst.msk [vmem:[#allocation2 + $0x140] sm:$0xff] %vm677, 0.0
      %720 = vst.msk [vmem:[#allocation2 + $0x148] sm:$0x3] %vm680, 0.0
      %721 = vst.msk [vmem:[#allocation2 + $0x150] sm:$0xff] %vm677, 0.0
      %722 = vst.msk [vmem:[#allocation2 + $0x158] sm:$0xff] %vm677, 0.0
      %723 = vst.msk [vmem:[#allocation2 + $0x160] sm:$0x3] %vm680, 0.0
      %724 = vst.msk [vmem:[#allocation2 + $0x168] sm:$0xff] %vm677, 0.0
      %725 = vst.msk [vmem:[#allocation2 + $0x170] sm:$0xff] %vm677, 0.0
      %726 = vst.msk [vmem:[#allocation2 + $0x178] sm:$0x3] %vm680, 0.0
      %727 = vst.msk [vmem:[#allocation2 + $0x180] sm:$0xff] %vm677, 0.0
      %728 = vst.msk [vmem:[#allocation2 + $0x188] sm:$0xff] %vm677, 0.0
      %729 = vst.msk [vmem:[#allocation2 + $0x190] sm:$0x3] %vm680, 0.0
      %730 = vst.msk [vmem:[#allocation2 + $0x198] sm:$0xff] %vm677, 0.0
      %731 = vst.msk [vmem:[#allocation2 + $0x1a0] sm:$0xff] %vm677, 0.0
      %732 = vst.msk [vmem:[#allocation2 + $0x1a8] sm:$0x3] %vm680, 0.0
      %s733 = scalar_lea.vmem [#allocation2], 24
      %734 = vst.msk [vmem:[%s733 + $0x1] sm:$0xff] %vm677, %v645
      %735 = vst.msk [vmem:[%s733 + $0x9] sm:$0xff] %vm677, %v646
      %736 = vst.msk [vmem:[%s733 + $0x19] sm:$0xff] %vm677, %v647
      %737 = vst.msk [vmem:[%s733 + $0x21] sm:$0xff] %vm677, %v648
      %738 = vst.msk [vmem:[%s733 + $0x31] sm:$0xff] %vm677, %v649
      %739 = vst.msk [vmem:[%s733 + $0x39] sm:$0xff] %vm677, %v650
      %740 = vst.msk [vmem:[%s733 + $0x49] sm:$0xff] %vm677, %v651
      %741 = vst.msk [vmem:[%s733 + $0x51] sm:$0xff] %vm677, %v652
      %742 = vst.msk [vmem:[%s733 + $0x61] sm:$0xff] %vm677, %v653
      %743 = vst.msk [vmem:[%s733 + $0x69] sm:$0xff] %vm677, %v654
      %744 = vst.msk [vmem:[%s733 + $0x79] sm:$0xff] %vm677, %v655
      %745 = vst.msk [vmem:[%s733 + $0x81] sm:$0xff] %vm677, %v656
      %746 = vst.msk [vmem:[%s733 + $0x91] sm:$0xff] %vm677, %v657
      %747 = vst.msk [vmem:[%s733 + $0x99] sm:$0xff] %vm677, %v658
      %748 = vst.msk [vmem:[%s733 + $0xa9] sm:$0xff] %vm677, %v659
      %749 = vst.msk [vmem:[%s733 + $0xb1] sm:$0xff] %vm677, %v660
      %750 = vst.msk [vmem:[%s733 + $0xc1] sm:$0xff] %vm677, %v661
      %751 = vst.msk [vmem:[%s733 + $0xc9] sm:$0xff] %vm677, %v662
      %752 = vst.msk [vmem:[%s733 + $0xd9] sm:$0xff] %vm677, %v663
      %753 = vst.msk [vmem:[%s733 + $0xe1] sm:$0xff] %vm677, %v664
      %754 = vst.msk [vmem:[%s733 + $0xf1] sm:$0xff] %vm677, %v665
      %755 = vst.msk [vmem:[%s733 + $0xf9] sm:$0xff] %vm677, %v666
      %756 = vst.msk [vmem:[%s733 + $0x109] sm:$0xff] %vm677, %v667
      %757 = vst.msk [vmem:[%s733 + $0x111] sm:$0xff] %vm677, %v668
      %758 = vst.msk [vmem:[%s733 + $0x121] sm:$0xff] %vm677, %v669
      %759 = vst.msk [vmem:[%s733 + $0x129] sm:$0xff] %vm677, %v670
      %760 = vst.msk [vmem:[%s733 + $0x139] sm:$0xff] %vm677, %v671
      %761 = vst.msk [vmem:[%s733 + $0x141] sm:$0xff] %vm677, %v672
      %762 = vst.msk [vmem:[%s733 + $0x151] sm:$0xff] %vm677, %v673
      %763 = vst.msk [vmem:[%s733 + $0x159] sm:$0xff] %vm677, %v674
      %764 = vst.msk [vmem:[%s733 + $0x169] sm:$0xff] %vm677, %v675
      %765 = vst.msk [vmem:[%s733 + $0x171] sm:$0xff] %vm677, %v676
      %v766 = vld [vmem:[#allocation2] sm:$0xff]
      %v767 = vld [vmem:[#allocation2 + $0x8] sm:$0xff]
      %v768 = vld [vmem:[#allocation2 + $0x10] sm:$0x3]
      %v769 = vld [vmem:[#allocation2 + $0x18] sm:$0xff]
      %v770 = vld [vmem:[#allocation2 + $0x20] sm:$0xff]
      %v771 = vld [vmem:[#allocation2 + $0x28] sm:$0x3]
      %v772 = vld [vmem:[#allocation2 + $0x30] sm:$0xff]
      %v773 = vld [vmem:[#allocation2 + $0x38] sm:$0xff]
      %v774 = vld [vmem:[#allocation2 + $0x40] sm:$0x3]
      %v775 = vld [vmem:[#allocation2 + $0x48] sm:$0xff]
      %v776 = vld [vmem:[#allocation2 + $0x50] sm:$0xff]
      %v777 = vld [vmem:[#allocation2 + $0x58] sm:$0x3]
      %v778 = vld [vmem:[#allocation2 + $0x60] sm:$0xff]
      %v779 = vld [vmem:[#allocation2 + $0x68] sm:$0xff]
      %v780 = vld [vmem:[#allocation2 + $0x70] sm:$0x3]
      %v781 = vld [vmem:[#allocation2 + $0x78] sm:$0xff]
      %v782 = vld [vmem:[#allocation2 + $0x80] sm:$0xff]
      %v783 = vld [vmem:[#allocation2 + $0x88] sm:$0x3]
      %v784 = vld [vmem:[#allocation2 + $0x90] sm:$0xff]
      %v785 = vld [vmem:[#allocation2 + $0x98] sm:$0xff]
      %v786 = vld [vmem:[#allocation2 + $0xa0] sm:$0x3]
      %v787 = vld [vmem:[#allocation2 + $0xa8] sm:$0xff]
      %v788 = vld [vmem:[#allocation2 + $0xb0] sm:$0xff]
      %v789 = vld [vmem:[#allocation2 + $0xb8] sm:$0x3]
      %v790 = vld [vmem:[#allocation2 + $0xc0] sm:$0xff]
      %v791 = vld [vmem:[#allocation2 + $0xc8] sm:$0xff]
      %v792 = vld [vmem:[#allocation2 + $0xd0] sm:$0x3]
      %v793 = vld [vmem:[#allocation2 + $0xd8] sm:$0xff]
      %v794 = vld [vmem:[#allocation2 + $0xe0] sm:$0xff]
      %v795 = vld [vmem:[#allocation2 + $0xe8] sm:$0x3]
      %v796 = vld [vmem:[#allocation2 + $0xf0] sm:$0xff]
      %v797 = vld [vmem:[#allocation2 + $0xf8] sm:$0xff]
      %v798 = vld [vmem:[#allocation2 + $0x100] sm:$0x3]
      %v799 = vld [vmem:[#allocation2 + $0x108] sm:$0xff]
      %v800 = vld [vmem:[#allocation2 + $0x110] sm:$0xff]
      %v801 = vld [vmem:[#allocation2 + $0x118] sm:$0x3]
      %v802 = vld [vmem:[#allocation2 + $0x120] sm:$0xff]
      %v803 = vld [vmem:[#allocation2 + $0x128] sm:$0xff]
      %v804 = vld [vmem:[#allocation2 + $0x130] sm:$0x3]
      %v805 = vld [vmem:[#allocation2 + $0x138] sm:$0xff]
      %v806 = vld [vmem:[#allocation2 + $0x140] sm:$0xff]
      %v807 = vld [vmem:[#allocation2 + $0x148] sm:$0x3]
      %v808 = vld [vmem:[#allocation2 + $0x150] sm:$0xff]
      %v809 = vld [vmem:[#allocation2 + $0x158] sm:$0xff]
      %v810 = vld [vmem:[#allocation2 + $0x160] sm:$0x3]
      %v811 = vld [vmem:[#allocation2 + $0x168] sm:$0xff]
      %v812 = vld [vmem:[#allocation2 + $0x170] sm:$0xff]
      %v813 = vld [vmem:[#allocation2 + $0x178] sm:$0x3]
      %v814 = vld [vmem:[#allocation2 + $0x180] sm:$0xff]
      %v815 = vld [vmem:[#allocation2 + $0x188] sm:$0xff]
      %v816 = vld [vmem:[#allocation2 + $0x190] sm:$0x3]
      %v817 = vld [vmem:[#allocation2 + $0x198] sm:$0xff]
      %v818 = vld [vmem:[#allocation2 + $0x1a0] sm:$0xff]
      %v819 = vld [vmem:[#allocation2 + $0x1a8] sm:$0x3]
      %v820 = vld [vmem:[%s3] sm:$0x7]
      %v821 = vld [vmem:[%s3 + $0x4] sm:$0x7]
      %v822 = vld [vmem:[%s3 + $0x8] sm:$0x7]
      %v823 = vlaneseq
      %v824 = vshrl.u32 %v823, 7
      %v825 = vsub.s32 0, %v824
      %v826 = vrot.slane %v820, %v825
      %v827 = vmul.f32 %v766, %v826
      %v828 = vmul.f32 %v767, %v826
      %v829 = vmul.f32 %v769, %v826
      %v830 = vmul.f32 %v770, %v826
      %v831 = vmul.f32 %v772, %v826
      %v832 = vmul.f32 %v773, %v826
      %v833 = vmul.f32 %v775, %v826
      %v834 = vmul.f32 %v776, %v826
      %v835 = vmul.f32 %v778, %v826
      %v836 = vmul.f32 %v779, %v826
      %v837 = vmul.f32 %v781, %v826
      %v838 = vmul.f32 %v782, %v826
      %v839 = vmul.f32 %v784, %v826
      %v840 = vmul.f32 %v785, %v826
      %v841 = vmul.f32 %v787, %v826
      %v842 = vmul.f32 %v788, %v826
      %v843 = vmul.f32 %v790, %v826
      %v844 = vmul.f32 %v791, %v826
      %v845 = vmul.f32 %v793, %v826
      %v846 = vmul.f32 %v794, %v826
      %v847 = vmul.f32 %v796, %v826
      %v848 = vmul.f32 %v797, %v826
      %v849 = vmul.f32 %v799, %v826
      %v850 = vmul.f32 %v800, %v826
      %v851 = vmul.f32 %v802, %v826
      %v852 = vmul.f32 %v803, %v826
      %v853 = vmul.f32 %v805, %v826
      %v854 = vmul.f32 %v806, %v826
      %v855 = vmul.f32 %v808, %v826
      %v856 = vmul.f32 %v809, %v826
      %v857 = vmul.f32 %v811, %v826
      %v858 = vmul.f32 %v812, %v826
      %v859 = vadd.f32 %v827, 0.0
      %v860 = vadd.f32 %v828, 0.0
      %v861 = vadd.f32 %v829, 0.0
      %v862 = vadd.f32 %v830, 0.0
      %v863 = vadd.f32 %v831, 0.0
      %v864 = vadd.f32 %v832, 0.0
      %v865 = vadd.f32 %v833, 0.0
      %v866 = vadd.f32 %v834, 0.0
      %v867 = vadd.f32 %v835, 0.0
      %v868 = vadd.f32 %v836, 0.0
      %v869 = vadd.f32 %v837, 0.0
      %v870 = vadd.f32 %v838, 0.0
      %v871 = vadd.f32 %v839, 0.0
      %v872 = vadd.f32 %v840, 0.0
      %v873 = vadd.f32 %v841, 0.0
      %v874 = vadd.f32 %v842, 0.0
      %v875 = vadd.f32 %v843, 0.0
      %v876 = vadd.f32 %v844, 0.0
      %v877 = vadd.f32 %v845, 0.0
      %v878 = vadd.f32 %v846, 0.0
      %v879 = vadd.f32 %v847, 0.0
      %v880 = vadd.f32 %v848, 0.0
      %v881 = vadd.f32 %v849, 0.0
      %v882 = vadd.f32 %v850, 0.0
      %v883 = vadd.f32 %v851, 0.0
      %v884 = vadd.f32 %v852, 0.0
      %v885 = vadd.f32 %v853, 0.0
      %v886 = vadd.f32 %v854, 0.0
      %v887 = vadd.f32 %v855, 0.0
      %v888 = vadd.f32 %v856, 0.0
      %v889 = vadd.f32 %v857, 0.0
      %v890 = vadd.f32 %v858, 0.0
      %v891 = vlaneseq
      %v892 = vshrl.u32 %v891, 7
      %v893 = vsub.s32 1, %v892
      %v894 = vrot.slane %v820, %v893
      %v895 = vmul.f32 %v766, %v894
      %v896 = vmul.f32 %v767, %v894
      %v897 = vmul.f32 %v768, %v894
      %v898 = vmul.f32 %v769, %v894
      %v899 = vmul.f32 %v770, %v894
      %v900 = vmul.f32 %v771, %v894
      %v901 = vmul.f32 %v772, %v894
      %v902 = vmul.f32 %v773, %v894
      %v903 = vmul.f32 %v774, %v894
      %v904 = vmul.f32 %v775, %v894
      %v905 = vmul.f32 %v776, %v894
      %v906 = vmul.f32 %v777, %v894
      %v907 = vmul.f32 %v778, %v894
      %v908 = vmul.f32 %v779, %v894
      %v909 = vmul.f32 %v780, %v894
      %v910 = vmul.f32 %v781, %v894
      %v911 = vmul.f32 %v782, %v894
      %v912 = vmul.f32 %v783, %v894
      %v913 = vmul.f32 %v784, %v894
      %v914 = vmul.f32 %v785, %v894
      %v915 = vmul.f32 %v786, %v894
      %v916 = vmul.f32 %v787, %v894
      %v917 = vmul.f32 %v788, %v894
      %v918 = vmul.f32 %v789, %v894
      %v919 = vmul.f32 %v790, %v894
      %v920 = vmul.f32 %v791, %v894
      %v921 = vmul.f32 %v792, %v894
      %v922 = vmul.f32 %v793, %v894
      %v923 = vmul.f32 %v794, %v894
      %v924 = vmul.f32 %v795, %v894
      %v925 = vmul.f32 %v796, %v894
      %v926 = vmul.f32 %v797, %v894
      %v927 = vmul.f32 %v798, %v894
      %v928 = vmul.f32 %v799, %v894
      %v929 = vmul.f32 %v800, %v894
      %v930 = vmul.f32 %v801, %v894
      %v931 = vmul.f32 %v802, %v894
      %v932 = vmul.f32 %v803, %v894
      %v933 = vmul.f32 %v804, %v894
      %v934 = vmul.f32 %v805, %v894
      %v935 = vmul.f32 %v806, %v894
      %v936 = vmul.f32 %v807, %v894
      %v937 = vmul.f32 %v808, %v894
      %v938 = vmul.f32 %v809, %v894
      %v939 = vmul.f32 %v810, %v894
      %v940 = vmul.f32 %v811, %v894
      %v941 = vmul.f32 %v812, %v894
      %v942 = vmul.f32 %v813, %v894
      %vm991 = vcmask 1046528
      %v992 = vrot.slane %v895, 1
      %v993 = vrot.slane %v896, 1
      %v994 = vsel %vm991, %v992, %v993
      %v995 = vrot.slane %v897, 1
      %v996 = vsel %vm991, %v993, %v995
      %v997 = vrot.slane %v898, 1
      %v998 = vrot.slane %v899, 1
      %v999 = vsel %vm991, %v997, %v998
      %v1000 = vrot.slane %v900, 1
      %v1001 = vsel %vm991, %v998, %v1000
      %v1002 = vrot.slane %v901, 1
      %v1003 = vrot.slane %v902, 1
      %v1004 = vsel %vm991, %v1002, %v1003
      %v1005 = vrot.slane %v903, 1
      %v1006 = vsel %vm991, %v1003, %v1005
      %v1007 = vrot.slane %v904, 1
      %v1008 = vrot.slane %v905, 1
      %v1009 = vsel %vm991, %v1007, %v1008
      %v1010 = vrot.slane %v906, 1
      %v1011 = vsel %vm991, %v1008, %v1010
      %v1012 = vrot.slane %v907, 1
      %v1013 = vrot.slane %v908, 1
      %v1014 = vsel %vm991, %v1012, %v1013
      %v1015 = vrot.slane %v909, 1
      %v1016 = vsel %vm991, %v1013, %v1015
      %v1017 = vrot.slane %v910, 1
      %v1018 = vrot.slane %v911, 1
      %v1019 = vsel %vm991, %v1017, %v1018
      %v1020 = vrot.slane %v912, 1
      %v1021 = vsel %vm991, %v1018, %v1020
      %v1022 = vrot.slane %v913, 1
      %v1023 = vrot.slane %v914, 1
      %v1024 = vsel %vm991, %v1022, %v1023
      %v1025 = vrot.slane %v915, 1
      %v1026 = vsel %vm991, %v1023, %v1025
      %v1027 = vrot.slane %v916, 1
      %v1028 = vrot.slane %v917, 1
      %v1029 = vsel %vm991, %v1027, %v1028
      %v1030 = vrot.slane %v918, 1
      %v1031 = vsel %vm991, %v1028, %v1030
      %v1032 = vrot.slane %v919, 1
      %v1033 = vrot.slane %v920, 1
      %v1034 = vsel %vm991, %v1032, %v1033
      %v1035 = vrot.slane %v921, 1
      %v1036 = vsel %vm991, %v1033, %v1035
      %v1037 = vrot.slane %v922, 1
      %v1038 = vrot.slane %v923, 1
      %v1039 = vsel %vm991, %v1037, %v1038
      %v1040 = vrot.slane %v924, 1
      %v1041 = vsel %vm991, %v1038, %v1040
      %v1042 = vrot.slane %v925, 1
      %v1043 = vrot.slane %v926, 1
      %v1044 = vsel %vm991, %v1042, %v1043
      %v1045 = vrot.slane %v927, 1
      %v1046 = vsel %vm991, %v1043, %v1045
      %v1047 = vrot.slane %v928, 1
      %v1048 = vrot.slane %v929, 1
      %v1049 = vsel %vm991, %v1047, %v1048
      %v1050 = vrot.slane %v930, 1
      %v1051 = vsel %vm991, %v1048, %v1050
      %v1052 = vrot.slane %v931, 1
      %v1053 = vrot.slane %v932, 1
      %v1054 = vsel %vm991, %v1052, %v1053
      %v1055 = vrot.slane %v933, 1
      %v1056 = vsel %vm991, %v1053, %v1055
      %v1057 = vrot.slane %v934, 1
      %v1058 = vrot.slane %v935, 1
      %v1059 = vsel %vm991, %v1057, %v1058
      %v1060 = vrot.slane %v936, 1
      %v1061 = vsel %vm991, %v1058, %v1060
      %v1062 = vrot.slane %v937, 1
      %v1063 = vrot.slane %v938, 1
      %v1064 = vsel %vm991, %v1062, %v1063
      %v1065 = vrot.slane %v939, 1
      %v1066 = vsel %vm991, %v1063, %v1065
      %v1067 = vrot.slane %v940, 1
      %v1068 = vrot.slane %v941, 1
      %v1069 = vsel %vm991, %v1067, %v1068
      %v1070 = vrot.slane %v942, 1
      %v1071 = vsel %vm991, %v1068, %v1070
      %v1104 = vadd.f32 %v859, %v994
      %v1105 = vadd.f32 %v860, %v996
      %v1106 = vadd.f32 %v861, %v999
      %v1107 = vadd.f32 %v862, %v1001
      %v1108 = vadd.f32 %v863, %v1004
      %v1109 = vadd.f32 %v864, %v1006
      %v1110 = vadd.f32 %v865, %v1009
      %v1111 = vadd.f32 %v866, %v1011
      %v1112 = vadd.f32 %v867, %v1014
      %v1113 = vadd.f32 %v868, %v1016
      %v1114 = vadd.f32 %v869, %v1019
      %v1115 = vadd.f32 %v870, %v1021
      %v1116 = vadd.f32 %v871, %v1024
      %v1117 = vadd.f32 %v872, %v1026
      %v1118 = vadd.f32 %v873, %v1029
      %v1119 = vadd.f32 %v874, %v1031
      %v1120 = vadd.f32 %v875, %v1034
      %v1121 = vadd.f32 %v876, %v1036
      %v1122 = vadd.f32 %v877, %v1039
      %v1123 = vadd.f32 %v878, %v1041
      %v1124 = vadd.f32 %v879, %v1044
      %v1125 = vadd.f32 %v880, %v1046
      %v1126 = vadd.f32 %v881, %v1049
      %v1127 = vadd.f32 %v882, %v1051
      %v1128 = vadd.f32 %v883, %v1054
      %v1129 = vadd.f32 %v884, %v1056
      %v1130 = vadd.f32 %v885, %v1059
      %v1131 = vadd.f32 %v886, %v1061
      %v1132 = vadd.f32 %v887, %v1064
      %v1133 = vadd.f32 %v888, %v1066
      %v1134 = vadd.f32 %v889, %v1069
      %v1135 = vadd.f32 %v890, %v1071
      %v1136 = vlaneseq
      %v1137 = vshrl.u32 %v1136, 7
      %v1138 = vsub.s32 2, %v1137
      %v1139 = vrot.slane %v820, %v1138
      %v1140 = vmul.f32 %v766, %v1139
      %v1141 = vmul.f32 %v767, %v1139
      %v1142 = vmul.f32 %v768, %v1139
      %v1143 = vmul.f32 %v769, %v1139
      %v1144 = vmul.f32 %v770, %v1139
      %v1145 = vmul.f32 %v771, %v1139
      %v1146 = vmul.f32 %v772, %v1139
      %v1147 = vmul.f32 %v773, %v1139
      %v1148 = vmul.f32 %v774, %v1139
      %v1149 = vmul.f32 %v775, %v1139
      %v1150 = vmul.f32 %v776, %v1139
      %v1151 = vmul.f32 %v777, %v1139
      %v1152 = vmul.f32 %v778, %v1139
      %v1153 = vmul.f32 %v779, %v1139
      %v1154 = vmul.f32 %v780, %v1139
      %v1155 = vmul.f32 %v781, %v1139
      %v1156 = vmul.f32 %v782, %v1139
      %v1157 = vmul.f32 %v783, %v1139
      %v1158 = vmul.f32 %v784, %v1139
      %v1159 = vmul.f32 %v785, %v1139
      %v1160 = vmul.f32 %v786, %v1139
      %v1161 = vmul.f32 %v787, %v1139
      %v1162 = vmul.f32 %v788, %v1139
      %v1163 = vmul.f32 %v789, %v1139
      %v1164 = vmul.f32 %v790, %v1139
      %v1165 = vmul.f32 %v791, %v1139
      %v1166 = vmul.f32 %v792, %v1139
      %v1167 = vmul.f32 %v793, %v1139
      %v1168 = vmul.f32 %v794, %v1139
      %v1169 = vmul.f32 %v795, %v1139
      %v1170 = vmul.f32 %v796, %v1139
      %v1171 = vmul.f32 %v797, %v1139
      %v1172 = vmul.f32 %v798, %v1139
      %v1173 = vmul.f32 %v799, %v1139
      %v1174 = vmul.f32 %v800, %v1139
      %v1175 = vmul.f32 %v801, %v1139
      %v1176 = vmul.f32 %v802, %v1139
      %v1177 = vmul.f32 %v803, %v1139
      %v1178 = vmul.f32 %v804, %v1139
      %v1179 = vmul.f32 %v805, %v1139
      %v1180 = vmul.f32 %v806, %v1139
      %v1181 = vmul.f32 %v807, %v1139
      %v1182 = vmul.f32 %v808, %v1139
      %v1183 = vmul.f32 %v809, %v1139
      %v1184 = vmul.f32 %v810, %v1139
      %v1185 = vmul.f32 %v811, %v1139
      %v1186 = vmul.f32 %v812, %v1139
      %v1187 = vmul.f32 %v813, %v1139
      %vm1236 = vcmask 1045504
      %v1237 = vrot.slane %v1140, 2
      %v1238 = vrot.slane %v1141, 2
      %v1239 = vsel %vm1236, %v1237, %v1238
      %v1240 = vrot.slane %v1142, 2
      %v1241 = vsel %vm1236, %v1238, %v1240
      %v1242 = vrot.slane %v1143, 2
      %v1243 = vrot.slane %v1144, 2
      %v1244 = vsel %vm1236, %v1242, %v1243
      %v1245 = vrot.slane %v1145, 2
      %v1246 = vsel %vm1236, %v1243, %v1245
      %v1247 = vrot.slane %v1146, 2
      %v1248 = vrot.slane %v1147, 2
      %v1249 = vsel %vm1236, %v1247, %v1248
      %v1250 = vrot.slane %v1148, 2
      %v1251 = vsel %vm1236, %v1248, %v1250
      %v1252 = vrot.slane %v1149, 2
      %v1253 = vrot.slane %v1150, 2
      %v1254 = vsel %vm1236, %v1252, %v1253
      %v1255 = vrot.slane %v1151, 2
      %v1256 = vsel %vm1236, %v1253, %v1255
      %v1257 = vrot.slane %v1152, 2
      %v1258 = vrot.slane %v1153, 2
      %v1259 = vsel %vm1236, %v1257, %v1258
      %v1260 = vrot.slane %v1154, 2
      %v1261 = vsel %vm1236, %v1258, %v1260
      %v1262 = vrot.slane %v1155, 2
      %v1263 = vrot.slane %v1156, 2
      %v1264 = vsel %vm1236, %v1262, %v1263
      %v1265 = vrot.slane %v1157, 2
      %v1266 = vsel %vm1236, %v1263, %v1265
      %v1267 = vrot.slane %v1158, 2
      %v1268 = vrot.slane %v1159, 2
      %v1269 = vsel %vm1236, %v1267, %v1268
      %v1270 = vrot.slane %v1160, 2
      %v1271 = vsel %vm1236, %v1268, %v1270
      %v1272 = vrot.slane %v1161, 2
      %v1273 = vrot.slane %v1162, 2
      %v1274 = vsel %vm1236, %v1272, %v1273
      %v1275 = vrot.slane %v1163, 2
      %v1276 = vsel %vm1236, %v1273, %v1275
      %v1277 = vrot.slane %v1164, 2
      %v1278 = vrot.slane %v1165, 2
      %v1279 = vsel %vm1236, %v1277, %v1278
      %v1280 = vrot.slane %v1166, 2
      %v1281 = vsel %vm1236, %v1278, %v1280
      %v1282 = vrot.slane %v1167, 2
      %v1283 = vrot.slane %v1168, 2
      %v1284 = vsel %vm1236, %v1282, %v1283
      %v1285 = vrot.slane %v1169, 2
      %v1286 = vsel %vm1236, %v1283, %v1285
      %v1287 = vrot.slane %v1170, 2
      %v1288 = vrot.slane %v1171, 2
      %v1289 = vsel %vm1236, %v1287, %v1288
      %v1290 = vrot.slane %v1172, 2
      %v1291 = vsel %vm1236, %v1288, %v1290
      %v1292 = vrot.slane %v1173, 2
      %v1293 = vrot.slane %v1174, 2
      %v1294 = vsel %vm1236, %v1292, %v1293
      %v1295 = vrot.slane %v1175, 2
      %v1296 = vsel %vm1236, %v1293, %v1295
      %v1297 = vrot.slane %v1176, 2
      %v1298 = vrot.slane %v1177, 2
      %v1299 = vsel %vm1236, %v1297, %v1298
      %v1300 = vrot.slane %v1178, 2
      %v1301 = vsel %vm1236, %v1298, %v1300
      %v1302 = vrot.slane %v1179, 2
      %v1303 = vrot.slane %v1180, 2
      %v1304 = vsel %vm1236, %v1302, %v1303
      %v1305 = vrot.slane %v1181, 2
      %v1306 = vsel %vm1236, %v1303, %v1305
      %v1307 = vrot.slane %v1182, 2
      %v1308 = vrot.slane %v1183, 2
      %v1309 = vsel %vm1236, %v1307, %v1308
      %v1310 = vrot.slane %v1184, 2
      %v1311 = vsel %vm1236, %v1308, %v1310
      %v1312 = vrot.slane %v1185, 2
      %v1313 = vrot.slane %v1186, 2
      %v1314 = vsel %vm1236, %v1312, %v1313
      %v1315 = vrot.slane %v1187, 2
      %v1316 = vsel %vm1236, %v1313, %v1315
      %v1349 = vadd.f32 %v1104, %v1239
      %v1350 = vadd.f32 %v1105, %v1241
      %v1351 = vadd.f32 %v1106, %v1244
      %v1352 = vadd.f32 %v1107, %v1246
      %v1353 = vadd.f32 %v1108, %v1249
      %v1354 = vadd.f32 %v1109, %v1251
      %v1355 = vadd.f32 %v1110, %v1254
      %v1356 = vadd.f32 %v1111, %v1256
      %v1357 = vadd.f32 %v1112, %v1259
      %v1358 = vadd.f32 %v1113, %v1261
      %v1359 = vadd.f32 %v1114, %v1264
      %v1360 = vadd.f32 %v1115, %v1266
      %v1361 = vadd.f32 %v1116, %v1269
      %v1362 = vadd.f32 %v1117, %v1271
      %v1363 = vadd.f32 %v1118, %v1274
      %v1364 = vadd.f32 %v1119, %v1276
      %v1365 = vadd.f32 %v1120, %v1279
      %v1366 = vadd.f32 %v1121, %v1281
      %v1367 = vadd.f32 %v1122, %v1284
      %v1368 = vadd.f32 %v1123, %v1286
      %v1369 = vadd.f32 %v1124, %v1289
      %v1370 = vadd.f32 %v1125, %v1291
      %v1371 = vadd.f32 %v1126, %v1294
      %v1372 = vadd.f32 %v1127, %v1296
      %v1373 = vadd.f32 %v1128, %v1299
      %v1374 = vadd.f32 %v1129, %v1301
      %v1375 = vadd.f32 %v1130, %v1304
      %v1376 = vadd.f32 %v1131, %v1306
      %v1377 = vadd.f32 %v1132, %v1309
      %v1378 = vadd.f32 %v1133, %v1311
      %v1379 = vadd.f32 %v1134, %v1314
      %v1380 = vadd.f32 %v1135, %v1316
      %v1381 = vlaneseq
      %v1382 = vshrl.u32 %v1381, 7
      %v1383 = vsub.s32 0, %v1382
      %v1384 = vrot.slane %v821, %v1383
      %v1385 = vmul.f32 %v769, %v1384
      %v1386 = vmul.f32 %v770, %v1384
      %v1387 = vmul.f32 %v772, %v1384
      %v1388 = vmul.f32 %v773, %v1384
      %v1389 = vmul.f32 %v775, %v1384
      %v1390 = vmul.f32 %v776, %v1384
      %v1391 = vmul.f32 %v778, %v1384
      %v1392 = vmul.f32 %v779, %v1384
      %v1393 = vmul.f32 %v781, %v1384
      %v1394 = vmul.f32 %v782, %v1384
      %v1395 = vmul.f32 %v784, %v1384
      %v1396 = vmul.f32 %v785, %v1384
      %v1397 = vmul.f32 %v787, %v1384
      %v1398 = vmul.f32 %v788, %v1384
      %v1399 = vmul.f32 %v790, %v1384
      %v1400 = vmul.f32 %v791, %v1384
      %v1401 = vmul.f32 %v793, %v1384
      %v1402 = vmul.f32 %v794, %v1384
      %v1403 = vmul.f32 %v796, %v1384
      %v1404 = vmul.f32 %v797, %v1384
      %v1405 = vmul.f32 %v799, %v1384
      %v1406 = vmul.f32 %v800, %v1384
      %v1407 = vmul.f32 %v802, %v1384
      %v1408 = vmul.f32 %v803, %v1384
      %v1409 = vmul.f32 %v805, %v1384
      %v1410 = vmul.f32 %v806, %v1384
      %v1411 = vmul.f32 %v808, %v1384
      %v1412 = vmul.f32 %v809, %v1384
      %v1413 = vmul.f32 %v811, %v1384
      %v1414 = vmul.f32 %v812, %v1384
      %v1415 = vmul.f32 %v814, %v1384
      %v1416 = vmul.f32 %v815, %v1384
      %v1417 = vadd.f32 %v1349, %v1385
      %v1418 = vadd.f32 %v1350, %v1386
      %v1419 = vadd.f32 %v1351, %v1387
      %v1420 = vadd.f32 %v1352, %v1388
      %v1421 = vadd.f32 %v1353, %v1389
      %v1422 = vadd.f32 %v1354, %v1390
      %v1423 = vadd.f32 %v1355, %v1391
      %v1424 = vadd.f32 %v1356, %v1392
      %v1425 = vadd.f32 %v1357, %v1393
      %v1426 = vadd.f32 %v1358, %v1394
      %v1427 = vadd.f32 %v1359, %v1395
      %v1428 = vadd.f32 %v1360, %v1396
      %v1429 = vadd.f32 %v1361, %v1397
      %v1430 = vadd.f32 %v1362, %v1398
      %v1431 = vadd.f32 %v1363, %v1399
      %v1432 = vadd.f32 %v1364, %v1400
      %v1433 = vadd.f32 %v1365, %v1401
      %v1434 = vadd.f32 %v1366, %v1402
      %v1435 = vadd.f32 %v1367, %v1403
      %v1436 = vadd.f32 %v1368, %v1404
      %v1437 = vadd.f32 %v1369, %v1405
      %v1438 = vadd.f32 %v1370, %v1406
      %v1439 = vadd.f32 %v1371, %v1407
      %v1440 = vadd.f32 %v1372, %v1408
      %v1441 = vadd.f32 %v1373, %v1409
      %v1442 = vadd.f32 %v1374, %v1410
      %v1443 = vadd.f32 %v1375, %v1411
      %v1444 = vadd.f32 %v1376, %v1412
      %v1445 = vadd.f32 %v1377, %v1413
      %v1446 = vadd.f32 %v1378, %v1414
      %v1447 = vadd.f32 %v1379, %v1415
      %v1448 = vadd.f32 %v1380, %v1416
      %v1449 = vlaneseq
      %v1450 = vshrl.u32 %v1449, 7
      %v1451 = vsub.s32 1, %v1450
      %v1452 = vrot.slane %v821, %v1451
      %v1453 = vmul.f32 %v769, %v1452
      %v1454 = vmul.f32 %v770, %v1452
      %v1455 = vmul.f32 %v771, %v1452
      %v1456 = vmul.f32 %v772, %v1452
      %v1457 = vmul.f32 %v773, %v1452
      %v1458 = vmul.f32 %v774, %v1452
      %v1459 = vmul.f32 %v775, %v1452
      %v1460 = vmul.f32 %v776, %v1452
      %v1461 = vmul.f32 %v777, %v1452
      %v1462 = vmul.f32 %v778, %v1452
      %v1463 = vmul.f32 %v779, %v1452
      %v1464 = vmul.f32 %v780, %v1452
      %v1465 = vmul.f32 %v781, %v1452
      %v1466 = vmul.f32 %v782, %v1452
      %v1467 = vmul.f32 %v783, %v1452
      %v1468 = vmul.f32 %v784, %v1452
      %v1469 = vmul.f32 %v785, %v1452
      %v1470 = vmul.f32 %v786, %v1452
      %v1471 = vmul.f32 %v787, %v1452
      %v1472 = vmul.f32 %v788, %v1452
      %v1473 = vmul.f32 %v789, %v1452
      %v1474 = vmul.f32 %v790, %v1452
      %v1475 = vmul.f32 %v791, %v1452
      %v1476 = vmul.f32 %v792, %v1452
      %v1477 = vmul.f32 %v793, %v1452
      %v1478 = vmul.f32 %v794, %v1452
      %v1479 = vmul.f32 %v795, %v1452
      %v1480 = vmul.f32 %v796, %v1452
      %v1481 = vmul.f32 %v797, %v1452
      %v1482 = vmul.f32 %v798, %v1452
      %v1483 = vmul.f32 %v799, %v1452
      %v1484 = vmul.f32 %v800, %v1452
      %v1485 = vmul.f32 %v801, %v1452
      %v1486 = vmul.f32 %v802, %v1452
      %v1487 = vmul.f32 %v803, %v1452
      %v1488 = vmul.f32 %v804, %v1452
      %v1489 = vmul.f32 %v805, %v1452
      %v1490 = vmul.f32 %v806, %v1452
      %v1491 = vmul.f32 %v807, %v1452
      %v1492 = vmul.f32 %v808, %v1452
      %v1493 = vmul.f32 %v809, %v1452
      %v1494 = vmul.f32 %v810, %v1452
      %v1495 = vmul.f32 %v811, %v1452
      %v1496 = vmul.f32 %v812, %v1452
      %v1497 = vmul.f32 %v813, %v1452
      %v1498 = vmul.f32 %v814, %v1452
      %v1499 = vmul.f32 %v815, %v1452
      %v1500 = vmul.f32 %v816, %v1452
      %v1549 = vrot.slane %v1453, 1
      %v1550 = vrot.slane %v1454, 1
      %v1551 = vsel %vm991, %v1549, %v1550
      %v1552 = vrot.slane %v1455, 1
      %v1553 = vsel %vm991, %v1550, %v1552
      %v1554 = vrot.slane %v1456, 1
      %v1555 = vrot.slane %v1457, 1
      %v1556 = vsel %vm991, %v1554, %v1555
      %v1557 = vrot.slane %v1458, 1
      %v1558 = vsel %vm991, %v1555, %v1557
      %v1559 = vrot.slane %v1459, 1
      %v1560 = vrot.slane %v1460, 1
      %v1561 = vsel %vm991, %v1559, %v1560
      %v1562 = vrot.slane %v1461, 1
      %v1563 = vsel %vm991, %v1560, %v1562
      %v1564 = vrot.slane %v1462, 1
      %v1565 = vrot.slane %v1463, 1
      %v1566 = vsel %vm991, %v1564, %v1565
      %v1567 = vrot.slane %v1464, 1
      %v1568 = vsel %vm991, %v1565, %v1567
      %v1569 = vrot.slane %v1465, 1
      %v1570 = vrot.slane %v1466, 1
      %v1571 = vsel %vm991, %v1569, %v1570
      %v1572 = vrot.slane %v1467, 1
      %v1573 = vsel %vm991, %v1570, %v1572
      %v1574 = vrot.slane %v1468, 1
      %v1575 = vrot.slane %v1469, 1
      %v1576 = vsel %vm991, %v1574, %v1575
      %v1577 = vrot.slane %v1470, 1
      %v1578 = vsel %vm991, %v1575, %v1577
      %v1579 = vrot.slane %v1471, 1
      %v1580 = vrot.slane %v1472, 1
      %v1581 = vsel %vm991, %v1579, %v1580
      %v1582 = vrot.slane %v1473, 1
      %v1583 = vsel %vm991, %v1580, %v1582
      %v1584 = vrot.slane %v1474, 1
      %v1585 = vrot.slane %v1475, 1
      %v1586 = vsel %vm991, %v1584, %v1585
      %v1587 = vrot.slane %v1476, 1
      %v1588 = vsel %vm991, %v1585, %v1587
      %v1589 = vrot.slane %v1477, 1
      %v1590 = vrot.slane %v1478, 1
      %v1591 = vsel %vm991, %v1589, %v1590
      %v1592 = vrot.slane %v1479, 1
      %v1593 = vsel %vm991, %v1590, %v1592
      %v1594 = vrot.slane %v1480, 1
      %v1595 = vrot.slane %v1481, 1
      %v1596 = vsel %vm991, %v1594, %v1595
      %v1597 = vrot.slane %v1482, 1
      %v1598 = vsel %vm991, %v1595, %v1597
      %v1599 = vrot.slane %v1483, 1
      %v1600 = vrot.slane %v1484, 1
      %v1601 = vsel %vm991, %v1599, %v1600
      %v1602 = vrot.slane %v1485, 1
      %v1603 = vsel %vm991, %v1600, %v1602
      %v1604 = vrot.slane %v1486, 1
      %v1605 = vrot.slane %v1487, 1
      %v1606 = vsel %vm991, %v1604, %v1605
      %v1607 = vrot.slane %v1488, 1
      %v1608 = vsel %vm991, %v1605, %v1607
      %v1609 = vrot.slane %v1489, 1
      %v1610 = vrot.slane %v1490, 1
      %v1611 = vsel %vm991, %v1609, %v1610
      %v1612 = vrot.slane %v1491, 1
      %v1613 = vsel %vm991, %v1610, %v1612
      %v1614 = vrot.slane %v1492, 1
      %v1615 = vrot.slane %v1493, 1
      %v1616 = vsel %vm991, %v1614, %v1615
      %v1617 = vrot.slane %v1494, 1
      %v1618 = vsel %vm991, %v1615, %v1617
      %v1619 = vrot.slane %v1495, 1
      %v1620 = vrot.slane %v1496, 1
      %v1621 = vsel %vm991, %v1619, %v1620
      %v1622 = vrot.slane %v1497, 1
      %v1623 = vsel %vm991, %v1620, %v1622
      %v1624 = vrot.slane %v1498, 1
      %v1625 = vrot.slane %v1499, 1
      %v1626 = vsel %vm991, %v1624, %v1625
      %v1627 = vrot.slane %v1500, 1
      %v1628 = vsel %vm991, %v1625, %v1627
      %v1661 = vadd.f32 %v1417, %v1551
      %v1662 = vadd.f32 %v1418, %v1553
      %v1663 = vadd.f32 %v1419, %v1556
      %v1664 = vadd.f32 %v1420, %v1558
      %v1665 = vadd.f32 %v1421, %v1561
      %v1666 = vadd.f32 %v1422, %v1563
      %v1667 = vadd.f32 %v1423, %v1566
      %v1668 = vadd.f32 %v1424, %v1568
      %v1669 = vadd.f32 %v1425, %v1571
      %v1670 = vadd.f32 %v1426, %v1573
      %v1671 = vadd.f32 %v1427, %v1576
      %v1672 = vadd.f32 %v1428, %v1578
      %v1673 = vadd.f32 %v1429, %v1581
      %v1674 = vadd.f32 %v1430, %v1583
      %v1675 = vadd.f32 %v1431, %v1586
      %v1676 = vadd.f32 %v1432, %v1588
      %v1677 = vadd.f32 %v1433, %v1591
      %v1678 = vadd.f32 %v1434, %v1593
      %v1679 = vadd.f32 %v1435, %v1596
      %v1680 = vadd.f32 %v1436, %v1598
      %v1681 = vadd.f32 %v1437, %v1601
      %v1682 = vadd.f32 %v1438, %v1603
      %v1683 = vadd.f32 %v1439, %v1606
      %v1684 = vadd.f32 %v1440, %v1608
      %v1685 = vadd.f32 %v1441, %v1611
      %v1686 = vadd.f32 %v1442, %v1613
      %v1687 = vadd.f32 %v1443, %v1616
      %v1688 = vadd.f32 %v1444, %v1618
      %v1689 = vadd.f32 %v1445, %v1621
      %v1690 = vadd.f32 %v1446, %v1623
      %v1691 = vadd.f32 %v1447, %v1626
      %v1692 = vadd.f32 %v1448, %v1628
      %v1693 = vlaneseq
      %v1694 = vshrl.u32 %v1693, 7
      %v1695 = vsub.s32 2, %v1694
      %v1696 = vrot.slane %v821, %v1695
      %v1697 = vmul.f32 %v769, %v1696
      %v1698 = vmul.f32 %v770, %v1696
      %v1699 = vmul.f32 %v771, %v1696
      %v1700 = vmul.f32 %v772, %v1696
      %v1701 = vmul.f32 %v773, %v1696
      %v1702 = vmul.f32 %v774, %v1696
      %v1703 = vmul.f32 %v775, %v1696
      %v1704 = vmul.f32 %v776, %v1696
      %v1705 = vmul.f32 %v777, %v1696
      %v1706 = vmul.f32 %v778, %v1696
      %v1707 = vmul.f32 %v779, %v1696
      %v1708 = vmul.f32 %v780, %v1696
      %v1709 = vmul.f32 %v781, %v1696
      %v1710 = vmul.f32 %v782, %v1696
      %v1711 = vmul.f32 %v783, %v1696
      %v1712 = vmul.f32 %v784, %v1696
      %v1713 = vmul.f32 %v785, %v1696
      %v1714 = vmul.f32 %v786, %v1696
      %v1715 = vmul.f32 %v787, %v1696
      %v1716 = vmul.f32 %v788, %v1696
      %v1717 = vmul.f32 %v789, %v1696
      %v1718 = vmul.f32 %v790, %v1696
      %v1719 = vmul.f32 %v791, %v1696
      %v1720 = vmul.f32 %v792, %v1696
      %v1721 = vmul.f32 %v793, %v1696
      %v1722 = vmul.f32 %v794, %v1696
      %v1723 = vmul.f32 %v795, %v1696
      %v1724 = vmul.f32 %v796, %v1696
      %v1725 = vmul.f32 %v797, %v1696
      %v1726 = vmul.f32 %v798, %v1696
      %v1727 = vmul.f32 %v799, %v1696
      %v1728 = vmul.f32 %v800, %v1696
      %v1729 = vmul.f32 %v801, %v1696
      %v1730 = vmul.f32 %v802, %v1696
      %v1731 = vmul.f32 %v803, %v1696
      %v1732 = vmul.f32 %v804, %v1696
      %v1733 = vmul.f32 %v805, %v1696
      %v1734 = vmul.f32 %v806, %v1696
      %v1735 = vmul.f32 %v807, %v1696
      %v1736 = vmul.f32 %v808, %v1696
      %v1737 = vmul.f32 %v809, %v1696
      %v1738 = vmul.f32 %v810, %v1696
      %v1739 = vmul.f32 %v811, %v1696
      %v1740 = vmul.f32 %v812, %v1696
      %v1741 = vmul.f32 %v813, %v1696
      %v1742 = vmul.f32 %v814, %v1696
      %v1743 = vmul.f32 %v815, %v1696
      %v1744 = vmul.f32 %v816, %v1696
      %v1793 = vrot.slane %v1697, 2
      %v1794 = vrot.slane %v1698, 2
      %v1795 = vsel %vm1236, %v1793, %v1794
      %v1796 = vrot.slane %v1699, 2
      %v1797 = vsel %vm1236, %v1794, %v1796
      %v1798 = vrot.slane %v1700, 2
      %v1799 = vrot.slane %v1701, 2
      %v1800 = vsel %vm1236, %v1798, %v1799
      %v1801 = vrot.slane %v1702, 2
      %v1802 = vsel %vm1236, %v1799, %v1801
      %v1803 = vrot.slane %v1703, 2
      %v1804 = vrot.slane %v1704, 2
      %v1805 = vsel %vm1236, %v1803, %v1804
      %v1806 = vrot.slane %v1705, 2
      %v1807 = vsel %vm1236, %v1804, %v1806
      %v1808 = vrot.slane %v1706, 2
      %v1809 = vrot.slane %v1707, 2
      %v1810 = vsel %vm1236, %v1808, %v1809
      %v1811 = vrot.slane %v1708, 2
      %v1812 = vsel %vm1236, %v1809, %v1811
      %v1813 = vrot.slane %v1709, 2
      %v1814 = vrot.slane %v1710, 2
      %v1815 = vsel %vm1236, %v1813, %v1814
      %v1816 = vrot.slane %v1711, 2
      %v1817 = vsel %vm1236, %v1814, %v1816
      %v1818 = vrot.slane %v1712, 2
      %v1819 = vrot.slane %v1713, 2
      %v1820 = vsel %vm1236, %v1818, %v1819
      %v1821 = vrot.slane %v1714, 2
      %v1822 = vsel %vm1236, %v1819, %v1821
      %v1823 = vrot.slane %v1715, 2
      %v1824 = vrot.slane %v1716, 2
      %v1825 = vsel %vm1236, %v1823, %v1824
      %v1826 = vrot.slane %v1717, 2
      %v1827 = vsel %vm1236, %v1824, %v1826
      %v1828 = vrot.slane %v1718, 2
      %v1829 = vrot.slane %v1719, 2
      %v1830 = vsel %vm1236, %v1828, %v1829
      %v1831 = vrot.slane %v1720, 2
      %v1832 = vsel %vm1236, %v1829, %v1831
      %v1833 = vrot.slane %v1721, 2
      %v1834 = vrot.slane %v1722, 2
      %v1835 = vsel %vm1236, %v1833, %v1834
      %v1836 = vrot.slane %v1723, 2
      %v1837 = vsel %vm1236, %v1834, %v1836
      %v1838 = vrot.slane %v1724, 2
      %v1839 = vrot.slane %v1725, 2
      %v1840 = vsel %vm1236, %v1838, %v1839
      %v1841 = vrot.slane %v1726, 2
      %v1842 = vsel %vm1236, %v1839, %v1841
      %v1843 = vrot.slane %v1727, 2
      %v1844 = vrot.slane %v1728, 2
      %v1845 = vsel %vm1236, %v1843, %v1844
      %v1846 = vrot.slane %v1729, 2
      %v1847 = vsel %vm1236, %v1844, %v1846
      %v1848 = vrot.slane %v1730, 2
      %v1849 = vrot.slane %v1731, 2
      %v1850 = vsel %vm1236, %v1848, %v1849
      %v1851 = vrot.slane %v1732, 2
      %v1852 = vsel %vm1236, %v1849, %v1851
      %v1853 = vrot.slane %v1733, 2
      %v1854 = vrot.slane %v1734, 2
      %v1855 = vsel %vm1236, %v1853, %v1854
      %v1856 = vrot.slane %v1735, 2
      %v1857 = vsel %vm1236, %v1854, %v1856
      %v1858 = vrot.slane %v1736, 2
      %v1859 = vrot.slane %v1737, 2
      %v1860 = vsel %vm1236, %v1858, %v1859
      %v1861 = vrot.slane %v1738, 2
      %v1862 = vsel %vm1236, %v1859, %v1861
      %v1863 = vrot.slane %v1739, 2
      %v1864 = vrot.slane %v1740, 2
      %v1865 = vsel %vm1236, %v1863, %v1864
      %v1866 = vrot.slane %v1741, 2
      %v1867 = vsel %vm1236, %v1864, %v1866
      %v1868 = vrot.slane %v1742, 2
      %v1869 = vrot.slane %v1743, 2
      %v1870 = vsel %vm1236, %v1868, %v1869
      %v1871 = vrot.slane %v1744, 2
      %v1872 = vsel %vm1236, %v1869, %v1871
      %v1905 = vadd.f32 %v1661, %v1795
      %v1906 = vadd.f32 %v1662, %v1797
      %v1907 = vadd.f32 %v1663, %v1800
      %v1908 = vadd.f32 %v1664, %v1802
      %v1909 = vadd.f32 %v1665, %v1805
      %v1910 = vadd.f32 %v1666, %v1807
      %v1911 = vadd.f32 %v1667, %v1810
      %v1912 = vadd.f32 %v1668, %v1812
      %v1913 = vadd.f32 %v1669, %v1815
      %v1914 = vadd.f32 %v1670, %v1817
      %v1915 = vadd.f32 %v1671, %v1820
      %v1916 = vadd.f32 %v1672, %v1822
      %v1917 = vadd.f32 %v1673, %v1825
      %v1918 = vadd.f32 %v1674, %v1827
      %v1919 = vadd.f32 %v1675, %v1830
      %v1920 = vadd.f32 %v1676, %v1832
      %v1921 = vadd.f32 %v1677, %v1835
      %v1922 = vadd.f32 %v1678, %v1837
      %v1923 = vadd.f32 %v1679, %v1840
      %v1924 = vadd.f32 %v1680, %v1842
      %v1925 = vadd.f32 %v1681, %v1845
      %v1926 = vadd.f32 %v1682, %v1847
      %v1927 = vadd.f32 %v1683, %v1850
      %v1928 = vadd.f32 %v1684, %v1852
      %v1929 = vadd.f32 %v1685, %v1855
      %v1930 = vadd.f32 %v1686, %v1857
      %v1931 = vadd.f32 %v1687, %v1860
      %v1932 = vadd.f32 %v1688, %v1862
      %v1933 = vadd.f32 %v1689, %v1865
      %v1934 = vadd.f32 %v1690, %v1867
      %v1935 = vadd.f32 %v1691, %v1870
      %v1936 = vadd.f32 %v1692, %v1872
      %v1937 = vlaneseq
      %v1938 = vshrl.u32 %v1937, 7
      %v1939 = vsub.s32 0, %v1938
      %v1940 = vrot.slane %v822, %v1939
      %v1941 = vmul.f32 %v772, %v1940
      %v1942 = vmul.f32 %v773, %v1940
      %v1943 = vmul.f32 %v775, %v1940
      %v1944 = vmul.f32 %v776, %v1940
      %v1945 = vmul.f32 %v778, %v1940
      %v1946 = vmul.f32 %v779, %v1940
      %v1947 = vmul.f32 %v781, %v1940
      %v1948 = vmul.f32 %v782, %v1940
      %v1949 = vmul.f32 %v784, %v1940
      %v1950 = vmul.f32 %v785, %v1940
      %v1951 = vmul.f32 %v787, %v1940
      %v1952 = vmul.f32 %v788, %v1940
      %v1953 = vmul.f32 %v790, %v1940
      %v1954 = vmul.f32 %v791, %v1940
      %v1955 = vmul.f32 %v793, %v1940
      %v1956 = vmul.f32 %v794, %v1940
      %v1957 = vmul.f32 %v796, %v1940
      %v1958 = vmul.f32 %v797, %v1940
      %v1959 = vmul.f32 %v799, %v1940
      %v1960 = vmul.f32 %v800, %v1940
      %v1961 = vmul.f32 %v802, %v1940
      %v1962 = vmul.f32 %v803, %v1940
      %v1963 = vmul.f32 %v805, %v1940
      %v1964 = vmul.f32 %v806, %v1940
      %v1965 = vmul.f32 %v808, %v1940
      %v1966 = vmul.f32 %v809, %v1940
      %v1967 = vmul.f32 %v811, %v1940
      %v1968 = vmul.f32 %v812, %v1940
      %v1969 = vmul.f32 %v814, %v1940
      %v1970 = vmul.f32 %v815, %v1940
      %v1971 = vmul.f32 %v817, %v1940
      %v1972 = vmul.f32 %v818, %v1940
      %v1973 = vadd.f32 %v1905, %v1941
      %v1974 = vadd.f32 %v1906, %v1942
      %v1975 = vadd.f32 %v1907, %v1943
      %v1976 = vadd.f32 %v1908, %v1944
      %v1977 = vadd.f32 %v1909, %v1945
      %v1978 = vadd.f32 %v1910, %v1946
      %v1979 = vadd.f32 %v1911, %v1947
      %v1980 = vadd.f32 %v1912, %v1948
      %v1981 = vadd.f32 %v1913, %v1949
      %v1982 = vadd.f32 %v1914, %v1950
      %v1983 = vadd.f32 %v1915, %v1951
      %v1984 = vadd.f32 %v1916, %v1952
      %v1985 = vadd.f32 %v1917, %v1953
      %v1986 = vadd.f32 %v1918, %v1954
      %v1987 = vadd.f32 %v1919, %v1955
      %v1988 = vadd.f32 %v1920, %v1956
      %v1989 = vadd.f32 %v1921, %v1957
      %v1990 = vadd.f32 %v1922, %v1958
      %v1991 = vadd.f32 %v1923, %v1959
      %v1992 = vadd.f32 %v1924, %v1960
      %v1993 = vadd.f32 %v1925, %v1961
      %v1994 = vadd.f32 %v1926, %v1962
      %v1995 = vadd.f32 %v1927, %v1963
      %v1996 = vadd.f32 %v1928, %v1964
      %v1997 = vadd.f32 %v1929, %v1965
      %v1998 = vadd.f32 %v1930, %v1966
      %v1999 = vadd.f32 %v1931, %v1967
      %v2000 = vadd.f32 %v1932, %v1968
      %v2001 = vadd.f32 %v1933, %v1969
      %v2002 = vadd.f32 %v1934, %v1970
      %v2003 = vadd.f32 %v1935, %v1971
      %v2004 = vadd.f32 %v1936, %v1972
      %v2005 = vlaneseq
      %v2006 = vshrl.u32 %v2005, 7
      %v2007 = vsub.s32 1, %v2006
      %v2008 = vrot.slane %v822, %v2007
      %v2009 = vmul.f32 %v772, %v2008
      %v2010 = vmul.f32 %v773, %v2008
      %v2011 = vmul.f32 %v774, %v2008
      %v2012 = vmul.f32 %v775, %v2008
      %v2013 = vmul.f32 %v776, %v2008
      %v2014 = vmul.f32 %v777, %v2008
      %v2015 = vmul.f32 %v778, %v2008
      %v2016 = vmul.f32 %v779, %v2008
      %v2017 = vmul.f32 %v780, %v2008
      %v2018 = vmul.f32 %v781, %v2008
      %v2019 = vmul.f32 %v782, %v2008
      %v2020 = vmul.f32 %v783, %v2008
      %v2021 = vmul.f32 %v784, %v2008
      %v2022 = vmul.f32 %v785, %v2008
      %v2023 = vmul.f32 %v786, %v2008
      %v2024 = vmul.f32 %v787, %v2008
      %v2025 = vmul.f32 %v788, %v2008
      %v2026 = vmul.f32 %v789, %v2008
      %v2027 = vmul.f32 %v790, %v2008
      %v2028 = vmul.f32 %v791, %v2008
      %v2029 = vmul.f32 %v792, %v2008
      %v2030 = vmul.f32 %v793, %v2008
      %v2031 = vmul.f32 %v794, %v2008
      %v2032 = vmul.f32 %v795, %v2008
      %v2033 = vmul.f32 %v796, %v2008
      %v2034 = vmul.f32 %v797, %v2008
      %v2035 = vmul.f32 %v798, %v2008
      %v2036 = vmul.f32 %v799, %v2008
      %v2037 = vmul.f32 %v800, %v2008
      %v2038 = vmul.f32 %v801, %v2008
      %v2039 = vmul.f32 %v802, %v2008
      %v2040 = vmul.f32 %v803, %v2008
      %v2041 = vmul.f32 %v804, %v2008
      %v2042 = vmul.f32 %v805, %v2008
      %v2043 = vmul.f32 %v806, %v2008
      %v2044 = vmul.f32 %v807, %v2008
      %v2045 = vmul.f32 %v808, %v2008
      %v2046 = vmul.f32 %v809, %v2008
      %v2047 = vmul.f32 %v810, %v2008
      %v2048 = vmul.f32 %v811, %v2008
      %v2049 = vmul.f32 %v812, %v2008
      %v2050 = vmul.f32 %v813, %v2008
      %v2051 = vmul.f32 %v814, %v2008
      %v2052 = vmul.f32 %v815, %v2008
      %v2053 = vmul.f32 %v816, %v2008
      %v2054 = vmul.f32 %v817, %v2008
      %v2055 = vmul.f32 %v818, %v2008
      %v2056 = vmul.f32 %v819, %v2008
      %v2105 = vrot.slane %v2009, 1
      %v2106 = vrot.slane %v2010, 1
      %v2107 = vsel %vm991, %v2105, %v2106
      %v2108 = vrot.slane %v2011, 1
      %v2109 = vsel %vm991, %v2106, %v2108
      %v2110 = vrot.slane %v2012, 1
      %v2111 = vrot.slane %v2013, 1
      %v2112 = vsel %vm991, %v2110, %v2111
      %v2113 = vrot.slane %v2014, 1
      %v2114 = vsel %vm991, %v2111, %v2113
      %v2115 = vrot.slane %v2015, 1
      %v2116 = vrot.slane %v2016, 1
      %v2117 = vsel %vm991, %v2115, %v2116
      %v2118 = vrot.slane %v2017, 1
      %v2119 = vsel %vm991, %v2116, %v2118
      %v2120 = vrot.slane %v2018, 1
      %v2121 = vrot.slane %v2019, 1
      %v2122 = vsel %vm991, %v2120, %v2121
      %v2123 = vrot.slane %v2020, 1
      %v2124 = vsel %vm991, %v2121, %v2123
      %v2125 = vrot.slane %v2021, 1
      %v2126 = vrot.slane %v2022, 1
      %v2127 = vsel %vm991, %v2125, %v2126
      %v2128 = vrot.slane %v2023, 1
      %v2129 = vsel %vm991, %v2126, %v2128
      %v2130 = vrot.slane %v2024, 1
      %v2131 = vrot.slane %v2025, 1
      %v2132 = vsel %vm991, %v2130, %v2131
      %v2133 = vrot.slane %v2026, 1
      %v2134 = vsel %vm991, %v2131, %v2133
      %v2135 = vrot.slane %v2027, 1
      %v2136 = vrot.slane %v2028, 1
      %v2137 = vsel %vm991, %v2135, %v2136
      %v2138 = vrot.slane %v2029, 1
      %v2139 = vsel %vm991, %v2136, %v2138
      %v2140 = vrot.slane %v2030, 1
      %v2141 = vrot.slane %v2031, 1
      %v2142 = vsel %vm991, %v2140, %v2141
      %v2143 = vrot.slane %v2032, 1
      %v2144 = vsel %vm991, %v2141, %v2143
      %v2145 = vrot.slane %v2033, 1
      %v2146 = vrot.slane %v2034, 1
      %v2147 = vsel %vm991, %v2145, %v2146
      %v2148 = vrot.slane %v2035, 1
      %v2149 = vsel %vm991, %v2146, %v2148
      %v2150 = vrot.slane %v2036, 1
      %v2151 = vrot.slane %v2037, 1
      %v2152 = vsel %vm991, %v2150, %v2151
      %v2153 = vrot.slane %v2038, 1
      %v2154 = vsel %vm991, %v2151, %v2153
      %v2155 = vrot.slane %v2039, 1
      %v2156 = vrot.slane %v2040, 1
      %v2157 = vsel %vm991, %v2155, %v2156
      %v2158 = vrot.slane %v2041, 1
      %v2159 = vsel %vm991, %v2156, %v2158
      %v2160 = vrot.slane %v2042, 1
      %v2161 = vrot.slane %v2043, 1
      %v2162 = vsel %vm991, %v2160, %v2161
      %v2163 = vrot.slane %v2044, 1
      %v2164 = vsel %vm991, %v2161, %v2163
      %v2165 = vrot.slane %v2045, 1
      %v2166 = vrot.slane %v2046, 1
      %v2167 = vsel %vm991, %v2165, %v2166
      %v2168 = vrot.slane %v2047, 1
      %v2169 = vsel %vm991, %v2166, %v2168
      %v2170 = vrot.slane %v2048, 1
      %v2171 = vrot.slane %v2049, 1
      %v2172 = vsel %vm991, %v2170, %v2171
      %v2173 = vrot.slane %v2050, 1
      %v2174 = vsel %vm991, %v2171, %v2173
      %v2175 = vrot.slane %v2051, 1
      %v2176 = vrot.slane %v2052, 1
      %v2177 = vsel %vm991, %v2175, %v2176
      %v2178 = vrot.slane %v2053, 1
      %v2179 = vsel %vm991, %v2176, %v2178
      %v2180 = vrot.slane %v2054, 1
      %v2181 = vrot.slane %v2055, 1
      %v2182 = vsel %vm991, %v2180, %v2181
      %v2183 = vrot.slane %v2056, 1
      %v2184 = vsel %vm991, %v2181, %v2183
      %v2217 = vadd.f32 %v1973, %v2107
      %v2218 = vadd.f32 %v1974, %v2109
      %v2219 = vadd.f32 %v1975, %v2112
      %v2220 = vadd.f32 %v1976, %v2114
      %v2221 = vadd.f32 %v1977, %v2117
      %v2222 = vadd.f32 %v1978, %v2119
      %v2223 = vadd.f32 %v1979, %v2122
      %v2224 = vadd.f32 %v1980, %v2124
      %v2225 = vadd.f32 %v1981, %v2127
      %v2226 = vadd.f32 %v1982, %v2129
      %v2227 = vadd.f32 %v1983, %v2132
      %v2228 = vadd.f32 %v1984, %v2134
      %v2229 = vadd.f32 %v1985, %v2137
      %v2230 = vadd.f32 %v1986, %v2139
      %v2231 = vadd.f32 %v1987, %v2142
      %v2232 = vadd.f32 %v1988, %v2144
      %v2233 = vadd.f32 %v1989, %v2147
      %v2234 = vadd.f32 %v1990, %v2149
      %v2235 = vadd.f32 %v1991, %v2152
      %v2236 = vadd.f32 %v1992, %v2154
      %v2237 = vadd.f32 %v1993, %v2157
      %v2238 = vadd.f32 %v1994, %v2159
      %v2239 = vadd.f32 %v1995, %v2162
      %v2240 = vadd.f32 %v1996, %v2164
      %v2241 = vadd.f32 %v1997, %v2167
      %v2242 = vadd.f32 %v1998, %v2169
      %v2243 = vadd.f32 %v1999, %v2172
      %v2244 = vadd.f32 %v2000, %v2174
      %v2245 = vadd.f32 %v2001, %v2177
      %v2246 = vadd.f32 %v2002, %v2179
      %v2247 = vadd.f32 %v2003, %v2182
      %v2248 = vadd.f32 %v2004, %v2184
      %v2249 = vlaneseq
      %v2250 = vshrl.u32 %v2249, 7
      %v2251 = vsub.s32 2, %v2250
      %v2252 = vrot.slane %v822, %v2251
      %v2253 = vmul.f32 %v772, %v2252
      %v2254 = vmul.f32 %v773, %v2252
      %v2255 = vmul.f32 %v774, %v2252
      %v2256 = vmul.f32 %v775, %v2252
      %v2257 = vmul.f32 %v776, %v2252
      %v2258 = vmul.f32 %v777, %v2252
      %v2259 = vmul.f32 %v778, %v2252
      %v2260 = vmul.f32 %v779, %v2252
      %v2261 = vmul.f32 %v780, %v2252
      %v2262 = vmul.f32 %v781, %v2252
      %v2263 = vmul.f32 %v782, %v2252
      %v2264 = vmul.f32 %v783, %v2252
      %v2265 = vmul.f32 %v784, %v2252
      %v2266 = vmul.f32 %v785, %v2252
      %v2267 = vmul.f32 %v786, %v2252
      %v2268 = vmul.f32 %v787, %v2252
      %v2269 = vmul.f32 %v788, %v2252
      %v2270 = vmul.f32 %v789, %v2252
      %v2271 = vmul.f32 %v790, %v2252
      %v2272 = vmul.f32 %v791, %v2252
      %v2273 = vmul.f32 %v792, %v2252
      %v2274 = vmul.f32 %v793, %v2252
      %v2275 = vmul.f32 %v794, %v2252
      %v2276 = vmul.f32 %v795, %v2252
      %v2277 = vmul.f32 %v796, %v2252
      %v2278 = vmul.f32 %v797, %v2252
      %v2279 = vmul.f32 %v798, %v2252
      %v2280 = vmul.f32 %v799, %v2252
      %v2281 = vmul.f32 %v800, %v2252
      %v2282 = vmul.f32 %v801, %v2252
      %v2283 = vmul.f32 %v802, %v2252
      %v2284 = vmul.f32 %v803, %v2252
      %v2285 = vmul.f32 %v804, %v2252
      %v2286 = vmul.f32 %v805, %v2252
      %v2287 = vmul.f32 %v806, %v2252
      %v2288 = vmul.f32 %v807, %v2252
      %v2289 = vmul.f32 %v808, %v2252
      %v2290 = vmul.f32 %v809, %v2252
      %v2291 = vmul.f32 %v810, %v2252
      %v2292 = vmul.f32 %v811, %v2252
      %v2293 = vmul.f32 %v812, %v2252
      %v2294 = vmul.f32 %v813, %v2252
      %v2295 = vmul.f32 %v814, %v2252
      %v2296 = vmul.f32 %v815, %v2252
      %v2297 = vmul.f32 %v816, %v2252
      %v2298 = vmul.f32 %v817, %v2252
      %v2299 = vmul.f32 %v818, %v2252
      %v2300 = vmul.f32 %v819, %v2252
      %v2349 = vrot.slane %v2253, 2
      %v2350 = vrot.slane %v2254, 2
      %v2351 = vsel %vm1236, %v2349, %v2350
      %v2352 = vrot.slane %v2255, 2
      %v2353 = vsel %vm1236, %v2350, %v2352
      %v2354 = vrot.slane %v2256, 2
      %v2355 = vrot.slane %v2257, 2
      %v2356 = vsel %vm1236, %v2354, %v2355
      %v2357 = vrot.slane %v2258, 2
      %v2358 = vsel %vm1236, %v2355, %v2357
      %v2359 = vrot.slane %v2259, 2
      %v2360 = vrot.slane %v2260, 2
      %v2361 = vsel %vm1236, %v2359, %v2360
      %v2362 = vrot.slane %v2261, 2
      %v2363 = vsel %vm1236, %v2360, %v2362
      %v2364 = vrot.slane %v2262, 2
      %v2365 = vrot.slane %v2263, 2
      %v2366 = vsel %vm1236, %v2364, %v2365
      %v2367 = vrot.slane %v2264, 2
      %v2368 = vsel %vm1236, %v2365, %v2367
      %v2369 = vrot.slane %v2265, 2
      %v2370 = vrot.slane %v2266, 2
      %v2371 = vsel %vm1236, %v2369, %v2370
      %v2372 = vrot.slane %v2267, 2
      %v2373 = vsel %vm1236, %v2370, %v2372
      %v2374 = vrot.slane %v2268, 2
      %v2375 = vrot.slane %v2269, 2
      %v2376 = vsel %vm1236, %v2374, %v2375
      %v2377 = vrot.slane %v2270, 2
      %v2378 = vsel %vm1236, %v2375, %v2377
      %v2379 = vrot.slane %v2271, 2
      %v2380 = vrot.slane %v2272, 2
      %v2381 = vsel %vm1236, %v2379, %v2380
      %v2382 = vrot.slane %v2273, 2
      %v2383 = vsel %vm1236, %v2380, %v2382
      %v2384 = vrot.slane %v2274, 2
      %v2385 = vrot.slane %v2275, 2
      %v2386 = vsel %vm1236, %v2384, %v2385
      %v2387 = vrot.slane %v2276, 2
      %v2388 = vsel %vm1236, %v2385, %v2387
      %v2389 = vrot.slane %v2277, 2
      %v2390 = vrot.slane %v2278, 2
      %v2391 = vsel %vm1236, %v2389, %v2390
      %v2392 = vrot.slane %v2279, 2
      %v2393 = vsel %vm1236, %v2390, %v2392
      %v2394 = vrot.slane %v2280, 2
      %v2395 = vrot.slane %v2281, 2
      %v2396 = vsel %vm1236, %v2394, %v2395
      %v2397 = vrot.slane %v2282, 2
      %v2398 = vsel %vm1236, %v2395, %v2397
      %v2399 = vrot.slane %v2283, 2
      %v2400 = vrot.slane %v2284, 2
      %v2401 = vsel %vm1236, %v2399, %v2400
      %v2402 = vrot.slane %v2285, 2
      %v2403 = vsel %vm1236, %v2400, %v2402
      %v2404 = vrot.slane %v2286, 2
      %v2405 = vrot.slane %v2287, 2
      %v2406 = vsel %vm1236, %v2404, %v2405
      %v2407 = vrot.slane %v2288, 2
      %v2408 = vsel %vm1236, %v2405, %v2407
      %v2409 = vrot.slane %v2289, 2
      %v2410 = vrot.slane %v2290, 2
      %v2411 = vsel %vm1236, %v2409, %v2410
      %v2412 = vrot.slane %v2291, 2
      %v2413 = vsel %vm1236, %v2410, %v2412
      %v2414 = vrot.slane %v2292, 2
      %v2415 = vrot.slane %v2293, 2
      %v2416 = vsel %vm1236, %v2414, %v2415
      %v2417 = vrot.slane %v2294, 2
      %v2418 = vsel %vm1236, %v2415, %v2417
      %v2419 = vrot.slane %v2295, 2
      %v2420 = vrot.slane %v2296, 2
      %v2421 = vsel %vm1236, %v2419, %v2420
      %v2422 = vrot.slane %v2297, 2
      %v2423 = vsel %vm1236, %v2420, %v2422
      %v2424 = vrot.slane %v2298, 2
      %v2425 = vrot.slane %v2299, 2
      %v2426 = vsel %vm1236, %v2424, %v2425
      %v2427 = vrot.slane %v2300, 2
      %v2428 = vsel %vm1236, %v2425, %v2427
      %v2461 = vadd.f32 %v2217, %v2351
      %v2462 = vadd.f32 %v2218, %v2353
      %v2463 = vadd.f32 %v2219, %v2356
      %v2464 = vadd.f32 %v2220, %v2358
      %v2465 = vadd.f32 %v2221, %v2361
      %v2466 = vadd.f32 %v2222, %v2363
      %v2467 = vadd.f32 %v2223, %v2366
      %v2468 = vadd.f32 %v2224, %v2368
      %v2469 = vadd.f32 %v2225, %v2371
      %v2470 = vadd.f32 %v2226, %v2373
      %v2471 = vadd.f32 %v2227, %v2376
      %v2472 = vadd.f32 %v2228, %v2378
      %v2473 = vadd.f32 %v2229, %v2381
      %v2474 = vadd.f32 %v2230, %v2383
      %v2475 = vadd.f32 %v2231, %v2386
      %v2476 = vadd.f32 %v2232, %v2388
      %v2477 = vadd.f32 %v2233, %v2391
      %v2478 = vadd.f32 %v2234, %v2393
      %v2479 = vadd.f32 %v2235, %v2396
      %v2480 = vadd.f32 %v2236, %v2398
      %v2481 = vadd.f32 %v2237, %v2401
      %v2482 = vadd.f32 %v2238, %v2403
      %v2483 = vadd.f32 %v2239, %v2406
      %v2484 = vadd.f32 %v2240, %v2408
      %v2485 = vadd.f32 %v2241, %v2411
      %v2486 = vadd.f32 %v2242, %v2413
      %v2487 = vadd.f32 %v2243, %v2416
      %v2488 = vadd.f32 %v2244, %v2418
      %v2489 = vadd.f32 %v2245, %v2421
      %v2490 = vadd.f32 %v2246, %v2423
      %v2491 = vadd.f32 %v2247, %v2426
      %v2492 = vadd.f32 %v2248, %v2428
      %v2493 = vld [vmem:[%s4] sm:$0x1]
      %v2495 = vlaneseq
      %v2496 = vshrl.u32 %v2495, 7
      %v2497 = vsub.s32 0, %v2496
      %v2498 = vrot.slane %v2493, %v2497
      %v2500 = vadd.f32 %v2461, %v2498
      %v2501 = vadd.f32 %v2462, %v2498
      %v2502 = vadd.f32 %v2463, %v2498
      %v2503 = vadd.f32 %v2464, %v2498
      %v2504 = vadd.f32 %v2465, %v2498
      %v2505 = vadd.f32 %v2466, %v2498
      %v2506 = vadd.f32 %v2467, %v2498
      %v2507 = vadd.f32 %v2468, %v2498
      %v2508 = vadd.f32 %v2469, %v2498
      %v2509 = vadd.f32 %v2470, %v2498
      %v2510 = vadd.f32 %v2471, %v2498
      %v2511 = vadd.f32 %v2472, %v2498
      %v2512 = vadd.f32 %v2473, %v2498
      %v2513 = vadd.f32 %v2474, %v2498
      %v2514 = vadd.f32 %v2475, %v2498
      %v2515 = vadd.f32 %v2476, %v2498
      %v2516 = vadd.f32 %v2477, %v2498
      %v2517 = vadd.f32 %v2478, %v2498
      %v2518 = vadd.f32 %v2479, %v2498
      %v2519 = vadd.f32 %v2480, %v2498
      %v2520 = vadd.f32 %v2481, %v2498
      %v2521 = vadd.f32 %v2482, %v2498
      %v2522 = vadd.f32 %v2483, %v2498
      %v2523 = vadd.f32 %v2484, %v2498
      %v2524 = vadd.f32 %v2485, %v2498
      %v2525 = vadd.f32 %v2486, %v2498
      %v2526 = vadd.f32 %v2487, %v2498
      %v2527 = vadd.f32 %v2488, %v2498
      %v2528 = vadd.f32 %v2489, %v2498
      %v2529 = vadd.f32 %v2490, %v2498
      %v2530 = vadd.f32 %v2491, %v2498
      %v2531 = vadd.f32 %v2492, %v2498
      %v2532 = vmax.f32 %v2500, 0.0
      %v2533 = vmax.f32 %v2501, 0.0
      %v2534 = vmax.f32 %v2502, 0.0
      %v2535 = vmax.f32 %v2503, 0.0
      %v2536 = vmax.f32 %v2504, 0.0
      %v2537 = vmax.f32 %v2505, 0.0
      %v2538 = vmax.f32 %v2506, 0.0
      %v2539 = vmax.f32 %v2507, 0.0
      %v2540 = vmax.f32 %v2508, 0.0
      %v2541 = vmax.f32 %v2509, 0.0
      %v2542 = vmax.f32 %v2510, 0.0
      %v2543 = vmax.f32 %v2511, 0.0
      %v2544 = vmax.f32 %v2512, 0.0
      %v2545 = vmax.f32 %v2513, 0.0
      %v2546 = vmax.f32 %v2514, 0.0
      %v2547 = vmax.f32 %v2515, 0.0
      %v2548 = vmax.f32 %v2516, 0.0
      %v2549 = vmax.f32 %v2517, 0.0
      %v2550 = vmax.f32 %v2518, 0.0
      %v2551 = vmax.f32 %v2519, 0.0
      %v2552 = vmax.f32 %v2520, 0.0
      %v2553 = vmax.f32 %v2521, 0.0
      %v2554 = vmax.f32 %v2522, 0.0
      %v2555 = vmax.f32 %v2523, 0.0
      %v2556 = vmax.f32 %v2524, 0.0
      %v2557 = vmax.f32 %v2525, 0.0
      %v2558 = vmax.f32 %v2526, 0.0
      %v2559 = vmax.f32 %v2527, 0.0
      %v2560 = vmax.f32 %v2528, 0.0
      %v2561 = vmax.f32 %v2529, 0.0
      %v2562 = vmax.f32 %v2530, 0.0
      %v2563 = vmax.f32 %v2531, 0.0
      %v2564 = vld [vmem:[%s5] sm:$0xff]
      %v2565 = vld [vmem:[%s5 + $0x8] sm:$0xff]
      %v2566 = vld [vmem:[%s5 + $0x10] sm:$0xff]
      %v2567 = vld [vmem:[%s6] sm:$0x1]
      %v2569 = vlaneseq
      %v2570 = vshrl.u32 %v2569, 7
      %v2571 = vsub.s32 0, %v2570
      %v2572 = vrot.slane %v2567, %v2571
      %v2575 = vsel %vm677, %v2532, 0
      %v2578 = vsel %vm677, %v2533, 0
      %v2581 = vsel %vm677, %v2534, 0
      %v2584 = vsel %vm677, %v2535, 0
      %v2587 = vsel %vm677, %v2536, 0
      %v2590 = vsel %vm677, %v2537, 0
      %v2593 = vsel %vm677, %v2538, 0
      %v2596 = vsel %vm677, %v2539, 0
      %v2599 = vsel %vm677, %v2540, 0
      %v2602 = vsel %vm677, %v2541, 0
      %v2605 = vsel %vm677, %v2542, 0
      %v2608 = vsel %vm677, %v2543, 0
      %v2611 = vsel %vm677, %v2544, 0
      %v2614 = vsel %vm677, %v2545, 0
      %v2617 = vsel %vm677, %v2546, 0
      %v2620 = vsel %vm677, %v2547, 0
      %v2623 = vsel %vm677, %v2548, 0
      %v2626 = vsel %vm677, %v2549, 0
      %v2629 = vsel %vm677, %v2550, 0
      %v2632 = vsel %vm677, %v2551, 0
      %v2635 = vsel %vm677, %v2552, 0
      %v2638 = vsel %vm677, %v2553, 0
      %v2641 = vsel %vm677, %v2554, 0
      %v2644 = vsel %vm677, %v2555, 0
      %v2647 = vsel %vm677, %v2556, 0
      %v2650 = vsel %vm677, %v2557, 0
      %v2653 = vsel %vm677, %v2558, 0
      %v2656 = vsel %vm677, %v2559, 0
      %v2659 = vsel %vm677, %v2560, 0
      %v2662 = vsel %vm677, %v2561, 0
      %v2665 = vsel %vm677, %v2562, 0
      %v2668 = vsel %vm677, %v2563, 0
      %2670 = vmatprep.subr.mxu0 0.0
      %2671 = vmatpush1.msra.mxu0 0.0
      %2672 = vmatprep.subr.mxu0 0.0
      %2673 = vmatpush1.msra.mxu0 0.0
      %2674 = vmatprep.subr.mxu0 0.0
      %2675 = vmatpush1.msra.mxu0 0.0
      %2676 = vmatprep.subr.mxu0 0.0
      %2677 = vmatpush1.msra.mxu0 0.0
      %2678 = vmatprep.subr.mxu0 0.0
      %2679 = vmatpush1.msra.mxu0 0.0
      %2680 = vmatprep.subr.mxu0 0.0
      %2681 = vmatpush1.msra.mxu0 0.0
      %2682 = vmatprep.subr.mxu0 0.0
      %2683 = vmatpush1.msra.mxu0 0.0
      %2684 = vmatprep.subr.mxu0 0.0
      %2685 = vmatpush1.msra.mxu0 0.0
      %2686 = vmatprep.subr.mxu0 0.0
      %2687 = vmatpush1.msra.mxu0 0.0
      %2688 = vmatprep.subr.mxu0 0.0
      %2689 = vmatpush1.msra.mxu0 0.0
      %2690 = vmatprep.subr.mxu0 0.0
      %2691 = vmatpush1.msra.mxu0 0.0
      %2692 = vmatprep.subr.mxu0 0.0
      %2693 = vmatpush1.msra.mxu0 0.0
      %2694 = vmatprep.subr.mxu0 0.0
      %2695 = vmatpush1.msra.mxu0 0.0
      %2696 = vmatprep.subr.mxu0 0.0
      %2697 = vmatpush1.msra.mxu0 %v2566
      %2698 = vmatprep.subr.mxu0 0.0
      %2699 = vmatpush1.msra.mxu0 %v2565
      %2700 = vmatprep.subr.mxu0 0.0
      %2701 = vmatpush1.msra.mxu0 %v2564
      %2702 = vmatprep.subr.mxu0 0.0
      %2703 = vmatpush2.msra.mxu0 0.0
      %2704 = vmatprep.subr.mxu0 0.0
      %2705 = vmatpush2.msra.mxu0 0.0
      %2706 = vmatprep.subr.mxu0 0.0
      %2707 = vmatpush2.msra.mxu0 0.0
      %2708 = vmatprep.subr.mxu0 0.0
      %2709 = vmatpush2.msra.mxu0 0.0
      %2710 = vmatprep.subr.mxu0 0.0
      %2711 = vmatpush2.msra.mxu0 0.0
      %2712 = vmatprep.subr.mxu0 0.0
      %2713 = vmatpush2.msra.mxu0 0.0
      %2714 = vmatprep.subr.mxu0 0.0
      %2715 = vmatpush2.msra.mxu0 0.0
      %2716 = vmatprep.subr.mxu0 0.0
      %2717 = vmatpush2.msra.mxu0 0.0
      %2718 = vmatprep.subr.mxu0 0.0
      %2719 = vmatpush2.msra.mxu0 0.0
      %2720 = vmatprep.subr.mxu0 0.0
      %2721 = vmatpush2.msra.mxu0 0.0
      %2722 = vmatprep.subr.mxu0 0.0
      %2723 = vmatpush2.msra.mxu0 0.0
      %2724 = vmatprep.subr.mxu0 0.0
      %2725 = vmatpush2.msra.mxu0 0.0
      %2726 = vmatprep.subr.mxu0 0.0
      %2727 = vmatpush2.msra.mxu0 0.0
      %2728 = vmatprep.subr.mxu0 0.0
      %2729 = vmatpush2.msra.mxu0 0.0
      %2730 = vmatprep.subr.mxu0 0.0
      %2731 = vmatpush2.msra.mxu0 0.0
      %2732 = vmatprep.subr.mxu0 0.0
      %2733 = vmatpush2.msra.mxu0 0.0
      %2734 = vmatprep.mubr.f32.mxu0 0.0
      %2735 = vmatmul.mubr.f32.gmra.mxu0 %v2575
      %v2736 = vpop.f32.mrf.mxu0
      %v2737 = vadd.f32 %v2572, %v2736
      %v2738 = vpop.f32.mrf.mxu0
      %2739 = vmatprep.mubr.f32.mxu0 0.0
      %2740 = vmatmul.mubr.f32.gmra.mxu0 %v2578
      %v2741 = vpop.f32.mrf.mxu0
      %v2742 = vadd.f32 %v2572, %v2741
      %v2743 = vpop.f32.mrf.mxu0
      %2744 = vmatprep.mubr.f32.mxu0 0.0
      %2745 = vmatmul.mubr.f32.gmra.mxu0 %v2581
      %v2746 = vpop.f32.mrf.mxu0
      %v2747 = vadd.f32 %v2572, %v2746
      %v2748 = vpop.f32.mrf.mxu0
      %2749 = vmatprep.mubr.f32.mxu0 0.0
      %2750 = vmatmul.mubr.f32.gmra.mxu0 %v2584
      %v2751 = vpop.f32.mrf.mxu0
      %v2752 = vadd.f32 %v2572, %v2751
      %v2753 = vpop.f32.mrf.mxu0
      %2754 = vmatprep.mubr.f32.mxu0 0.0
      %2755 = vmatmul.mubr.f32.gmra.mxu0 %v2587
      %v2756 = vpop.f32.mrf.mxu0
      %v2757 = vadd.f32 %v2572, %v2756
      %v2758 = vpop.f32.mrf.mxu0
      %2759 = vmatprep.mubr.f32.mxu0 0.0
      %2760 = vmatmul.mubr.f32.gmra.mxu0 %v2590
      %v2761 = vpop.f32.mrf.mxu0
      %v2762 = vadd.f32 %v2572, %v2761
      %v2763 = vpop.f32.mrf.mxu0
      %2764 = vmatprep.mubr.f32.mxu0 0.0
      %2765 = vmatmul.mubr.f32.gmra.mxu0 %v2593
      %v2766 = vpop.f32.mrf.mxu0
      %v2767 = vadd.f32 %v2572, %v2766
      %v2768 = vpop.f32.mrf.mxu0
      %2769 = vmatprep.mubr.f32.mxu0 0.0
      %2770 = vmatmul.mubr.f32.gmra.mxu0 %v2596
      %v2771 = vpop.f32.mrf.mxu0
      %v2772 = vadd.f32 %v2572, %v2771
      %v2773 = vpop.f32.mrf.mxu0
      %2774 = vmatprep.mubr.f32.mxu0 0.0
      %2775 = vmatmul.mubr.f32.gmra.mxu0 %v2599
      %v2776 = vpop.f32.mrf.mxu0
      %v2777 = vadd.f32 %v2572, %v2776
      %v2778 = vpop.f32.mrf.mxu0
      %2779 = vmatprep.mubr.f32.mxu0 0.0
      %2780 = vmatmul.mubr.f32.gmra.mxu0 %v2602
      %v2781 = vpop.f32.mrf.mxu0
      %v2782 = vadd.f32 %v2572, %v2781
      %v2783 = vpop.f32.mrf.mxu0
      %2784 = vmatprep.mubr.f32.mxu0 0.0
      %2785 = vmatmul.mubr.f32.gmra.mxu0 %v2605
      %v2786 = vpop.f32.mrf.mxu0
      %v2787 = vadd.f32 %v2572, %v2786
      %v2788 = vpop.f32.mrf.mxu0
      %2789 = vmatprep.mubr.f32.mxu0 0.0
      %2790 = vmatmul.mubr.f32.gmra.mxu0 %v2608
      %v2791 = vpop.f32.mrf.mxu0
      %v2792 = vadd.f32 %v2572, %v2791
      %v2793 = vpop.f32.mrf.mxu0
      %2794 = vmatprep.mubr.f32.mxu0 0.0
      %2795 = vmatmul.mubr.f32.gmra.mxu0 %v2611
      %v2796 = vpop.f32.mrf.mxu0
      %v2797 = vadd.f32 %v2572, %v2796
      %v2798 = vpop.f32.mrf.mxu0
      %2799 = vmatprep.mubr.f32.mxu0 0.0
      %2800 = vmatmul.mubr.f32.gmra.mxu0 %v2614
      %v2801 = vpop.f32.mrf.mxu0
      %v2802 = vadd.f32 %v2572, %v2801
      %v2803 = vpop.f32.mrf.mxu0
      %2804 = vmatprep.mubr.f32.mxu0 0.0
      %2805 = vmatmul.mubr.f32.gmra.mxu0 %v2617
      %v2806 = vpop.f32.mrf.mxu0
      %v2807 = vadd.f32 %v2572, %v2806
      %v2808 = vpop.f32.mrf.mxu0
      %2809 = vmatprep.mubr.f32.mxu0 0.0
      %2810 = vmatmul.mubr.f32.gmra.mxu0 %v2620
      %v2811 = vpop.f32.mrf.mxu0
      %v2812 = vadd.f32 %v2572, %v2811
      %v2813 = vpop.f32.mrf.mxu0
      %2814 = vmatprep.mubr.f32.mxu0 0.0
      %2815 = vmatmul.mubr.f32.gmra.mxu0 %v2623
      %v2816 = vpop.f32.mrf.mxu0
      %v2817 = vadd.f32 %v2572, %v2816
      %v2818 = vpop.f32.mrf.mxu0
      %2819 = vmatprep.mubr.f32.mxu0 0.0
      %2820 = vmatmul.mubr.f32.gmra.mxu0 %v2626
      %v2821 = vpop.f32.mrf.mxu0
      %v2822 = vadd.f32 %v2572, %v2821
      %v2823 = vpop.f32.mrf.mxu0
      %2824 = vmatprep.mubr.f32.mxu0 0.0
      %2825 = vmatmul.mubr.f32.gmra.mxu0 %v2629
      %v2826 = vpop.f32.mrf.mxu0
      %v2827 = vadd.f32 %v2572, %v2826
      %v2828 = vpop.f32.mrf.mxu0
      %2829 = vmatprep.mubr.f32.mxu0 0.0
      %2830 = vmatmul.mubr.f32.gmra.mxu0 %v2632
      %v2831 = vpop.f32.mrf.mxu0
      %v2832 = vadd.f32 %v2572, %v2831
      %v2833 = vpop.f32.mrf.mxu0
      %2834 = vmatprep.mubr.f32.mxu0 0.0
      %2835 = vmatmul.mubr.f32.gmra.mxu0 %v2635
      %v2836 = vpop.f32.mrf.mxu0
      %v2837 = vadd.f32 %v2572, %v2836
      %v2838 = vpop.f32.mrf.mxu0
      %2839 = vmatprep.mubr.f32.mxu0 0.0
      %2840 = vmatmul.mubr.f32.gmra.mxu0 %v2638
      %v2841 = vpop.f32.mrf.mxu0
      %v2842 = vadd.f32 %v2572, %v2841
      %v2843 = vpop.f32.mrf.mxu0
      %2844 = vmatprep.mubr.f32.mxu0 0.0
      %2845 = vmatmul.mubr.f32.gmra.mxu0 %v2641
      %v2846 = vpop.f32.mrf.mxu0
      %v2847 = vadd.f32 %v2572, %v2846
      %v2848 = vpop.f32.mrf.mxu0
      %2849 = vmatprep.mubr.f32.mxu0 0.0
      %2850 = vmatmul.mubr.f32.gmra.mxu0 %v2644
      %v2851 = vpop.f32.mrf.mxu0
      %v2852 = vadd.f32 %v2572, %v2851
      %v2853 = vpop.f32.mrf.mxu0
      %2854 = vmatprep.mubr.f32.mxu0 0.0
      %2855 = vmatmul.mubr.f32.gmra.mxu0 %v2647
      %v2856 = vpop.f32.mrf.mxu0
      %v2857 = vadd.f32 %v2572, %v2856
      %v2858 = vpop.f32.mrf.mxu0
      %2859 = vmatprep.mubr.f32.mxu0 0.0
      %2860 = vmatmul.mubr.f32.gmra.mxu0 %v2650
      %v2861 = vpop.f32.mrf.mxu0
      %v2862 = vadd.f32 %v2572, %v2861
      %v2863 = vpop.f32.mrf.mxu0
      %2864 = vmatprep.mubr.f32.mxu0 0.0
      %2865 = vmatmul.mubr.f32.gmra.mxu0 %v2653
      %v2866 = vpop.f32.mrf.mxu0
      %v2867 = vadd.f32 %v2572, %v2866
      %v2868 = vpop.f32.mrf.mxu0
      %2869 = vmatprep.mubr.f32.mxu0 0.0
      %2870 = vmatmul.mubr.f32.gmra.mxu0 %v2656
      %v2871 = vpop.f32.mrf.mxu0
      %v2872 = vadd.f32 %v2572, %v2871
      %v2873 = vpop.f32.mrf.mxu0
      %2874 = vmatprep.mubr.f32.mxu0 0.0
      %2875 = vmatmul.mubr.f32.gmra.mxu0 %v2659
      %v2876 = vpop.f32.mrf.mxu0
      %v2877 = vadd.f32 %v2572, %v2876
      %v2878 = vpop.f32.mrf.mxu0
      %2879 = vmatprep.mubr.f32.mxu0 0.0
      %2880 = vmatmul.mubr.f32.gmra.mxu0 %v2662
      %v2881 = vpop.f32.mrf.mxu0
      %v2882 = vadd.f32 %v2572, %v2881
      %v2883 = vpop.f32.mrf.mxu0
      %2884 = vmatprep.mubr.f32.mxu0 0.0
      %2885 = vmatmul.mubr.f32.gmra.mxu0 %v2665
      %v2886 = vpop.f32.mrf.mxu0
      %v2887 = vadd.f32 %v2572, %v2886
      %v2888 = vpop.f32.mrf.mxu0
      %2889 = vmatprep.mubr.f32.mxu0 0.0
      %2890 = vmatmul.mubr.f32.gmra.mxu0 %v2668
      %v2891 = vpop.f32.mrf.mxu0
      %v2892 = vadd.f32 %v2572, %v2891
      %v2893 = vpop.f32.mrf.mxu0
      %2894 = vdwg.mxu0
      %vm2895 = vcmask 64512
      %2896 = vst.msk [vmem:[%s278] sm:$0xff] %vm2895, %v2737
      %2897 = vst.msk [vmem:[%s278 + $0x8] sm:$0xff] %vm2895, %v2742
      %2898 = vst.msk [vmem:[%s278 + $0x10] sm:$0xff] %vm2895, %v2747
      %2899 = vst.msk [vmem:[%s278 + $0x18] sm:$0xff] %vm2895, %v2752
      %2900 = vst.msk [vmem:[%s278 + $0x20] sm:$0xff] %vm2895, %v2757
      %2901 = vst.msk [vmem:[%s278 + $0x28] sm:$0xff] %vm2895, %v2762
      %2902 = vst.msk [vmem:[%s278 + $0x30] sm:$0xff] %vm2895, %v2767
      %2903 = vst.msk [vmem:[%s278 + $0x38] sm:$0xff] %vm2895, %v2772
      %2904 = vst.msk [vmem:[%s278 + $0x40] sm:$0xff] %vm2895, %v2777
      %2905 = vst.msk [vmem:[%s278 + $0x48] sm:$0xff] %vm2895, %v2782
      %2906 = vst.msk [vmem:[%s278 + $0x50] sm:$0xff] %vm2895, %v2787
      %2907 = vst.msk [vmem:[%s278 + $0x58] sm:$0xff] %vm2895, %v2792
      %2908 = vst.msk [vmem:[%s278 + $0x60] sm:$0xff] %vm2895, %v2797
      %2909 = vst.msk [vmem:[%s278 + $0x68] sm:$0xff] %vm2895, %v2802
      %2910 = vst.msk [vmem:[%s278 + $0x70] sm:$0xff] %vm2895, %v2807
      %2911 = vst.msk [vmem:[%s278 + $0x78] sm:$0xff] %vm2895, %v2812
      %2912 = vst.msk [vmem:[%s278 + $0x80] sm:$0xff] %vm2895, %v2817
      %2913 = vst.msk [vmem:[%s278 + $0x88] sm:$0xff] %vm2895, %v2822
      %2914 = vst.msk [vmem:[%s278 + $0x90] sm:$0xff] %vm2895, %v2827
      %2915 = vst.msk [vmem:[%s278 + $0x98] sm:$0xff] %vm2895, %v2832
      %2916 = vst.msk [vmem:[%s278 + $0xa0] sm:$0xff] %vm2895, %v2837
      %2917 = vst.msk [vmem:[%s278 + $0xa8] sm:$0xff] %vm2895, %v2842
      %2918 = vst.msk [vmem:[%s278 + $0xb0] sm:$0xff] %vm2895, %v2847
      %2919 = vst.msk [vmem:[%s278 + $0xb8] sm:$0xff] %vm2895, %v2852
      %2920 = vst.msk [vmem:[%s278 + $0xc0] sm:$0xff] %vm2895, %v2857
      %2921 = vst.msk [vmem:[%s278 + $0xc8] sm:$0xff] %vm2895, %v2862
      %2922 = vst.msk [vmem:[%s278 + $0xd0] sm:$0xff] %vm2895, %v2867
      %2923 = vst.msk [vmem:[%s278 + $0xd8] sm:$0xff] %vm2895, %v2872
      %2924 = vst.msk [vmem:[%s278 + $0xe0] sm:$0xff] %vm2895, %v2877
      %2925 = vst.msk [vmem:[%s278 + $0xe8] sm:$0xff] %vm2895, %v2882
      %2926 = vst.msk [vmem:[%s278 + $0xf0] sm:$0xff] %vm2895, %v2887
      %2927 = vst.msk [vmem:[%s278 + $0xf8] sm:$0xff] %vm2895, %v2892
      %p2928 = scmp.lt.s32.totalorder %s18, 1
      %s2929 = scalar_select %p2928, %s18, 1
      %s2930 = smul.addr %s2929, 32
      %s2931 = smul.addr %s2930, 8
      %s2932 = scalar_lea.vmem %s7, %s2931
      // Predicated region
      $region49: #{tpu_custom_call.1} parent=47 // pred_check
        %p2933 = pneg %p188
      $region50: #{tpu_custom_call.1} parent=47 // pred_check_branch
        %2935 = sbr.rel (%p2933) target = $region52
      $region51: #{tpu_custom_call.1} parent=47 // pred_region
        _
      $region52: #{tpu_custom_call.1} parent=47 // pred_fallthru
        _
    $region48: #{tpu_custom_call.1} parent=5 // pred_fallthru
      _
    %p2936 = scmp.le.s32.totalorder 2, %s13
    // Predicated region
    $region53: #{tpu_custom_call.1} parent=5 // pred_check
      %p2937 = pneg %p2936
    $region54: #{tpu_custom_call.1} parent=5 // pred_check_branch
      %2939 = sbr.rel (%p2937) target = $region56
    $region55: #{tpu_custom_call.1} parent=5 // pred_region
      %s2940 = ssub.s32 %s13, 2
      // Predicated region
      $region57: #{tpu_custom_call.1} parent=55 // pred_check
        %p2941 = pneg %p194
      $region58: #{tpu_custom_call.1} parent=55 // pred_check_branch
        %2943 = sbr.rel (%p2941) target = $region60
      $region59: #{tpu_custom_call.1} parent=55 // pred_region
        %p2944 = scmp.lt.s32.totalorder %s19, 1
        %s2945 = scalar_select %p2944, %s19, 1
        %s2946 = smul.addr %s2945, 32
        %s2947 = smul.addr %s2946, 8
        %s2948 = scalar_lea.vmem %s7, %s2947
      $region60: #{tpu_custom_call.1} parent=55 // pred_fallthru
        _
    $region56: #{tpu_custom_call.1} parent=5 // pred_fallthru
      _
  $region6: #{tpu_custom_call.1} parent=0 // loop_footer
    %s17 = sadd.s32 1, %s13
  $region7: #{tpu_custom_call.1} parent=0 // loop_footer_branch
    %12 = sbr.rel target = $region3
  $region8: #{tpu_custom_call.1} parent=0 // loop_exit
    _

</llo_original>
